<compile_context>
chip_gen: v7x
topology: tpu7x:2x2x1
jax: 0.10.0
libtpu: 0.0.40
codegen_flags: <defaults>
</compile_context>

<pallas_src>
import functools

import jax
import jax.numpy as jnp
import numpy as np
from jax import lax
from jax.experimental import pallas as pl
from jax.experimental.pallas import tpu as pltpu

HIDDEN = 64


def _critic_kernel(xs_ref, xa_ref, h0_ref, c0_ref,
                   w1s_ref, w1a_ref, wl_ref, bl_ref, vec_ref,
                   q_ref, hout_ref, cout_ref, *, B, T):
    H = HIDDEN
    GH = 4 * H

    # ---- Hoisted, non-recurrent matmuls over all timesteps ----------------
    # Linear1 + ReLU:  xs@W1s + xa@W1a + b1   (b1 = vec[0])
    xh = jnp.dot(xs_ref[...], w1s_ref[...], preferred_element_type=jnp.float32)
    xh = xh + jnp.dot(xa_ref[...], w1a_ref[...], preferred_element_type=jnp.float32)
    xh = jnp.maximum(xh + vec_ref[0:1, :], 0.0)                     # [B*T, H]
    # x @ W_ih + (b_ih + b_hh), gate columns already reordered to (i, f, o, g)
    xg = jnp.dot(xh, wl_ref[:H, :], preferred_element_type=jnp.float32) + bl_ref[...]
    xg = xg.reshape(B, T, GH)                                       # free row regrouping

    whh = wl_ref[H:, :]                                             # [H, 4H]
    h = h0_ref[0]                                                   # [B, H]
    c = c0_ref[0]                                                   # [B, H]

    # ---- Sequential LSTM recurrence (fully unrolled; T small & static) ----
    hs = []
    for t in range(T):
        # xg[:, t, :] is loop-invariant w.r.t. the recurrence -> scheduled
        # off the serial h->h chain (one basic block, LLO hoists it).
        gates = xg[:, t, :] + jnp.dot(h, whh,
                                      preferred_element_type=jnp.float32)   # [B, 4H]
        # Gate order (i, f, o, g): one EUP tanh over 3H lanes (sigmoids) +
        # one over H lanes (cell gate). sigmoid(x) = 0.5*tanh(0.5*x) + 0.5.
        sig = 0.5 * jnp.tanh(0.5 * gates[:, :3 * H]) + 0.5
        g_g = jnp.tanh(gates[:, 3 * H:])
        i_g = sig[:, :H]
        f_g = sig[:, H:2 * H]
        o_g = sig[:, 2 * H:]
        c = f_g * c + i_g * g_g
        h = o_g * jnp.tanh(c)
        hs.append(h)

    hout_ref[0] = h
    cout_ref[0] = c

    # ---- Linear2 once, after the recurrence: VPU mul + lane reduce ---------
    w2row = vec_ref[1:2, :]                                          # [1, H]
    b2 = vec_ref[2:3, 0:1]                                           # [1, 1]
    q_cols = [jnp.sum(ht * w2row, axis=-1, keepdims=True) for ht in hs]   # T x [B, 1]
    q_ref[...] = jnp.concatenate(q_cols, axis=1) + b2                # one [B, T] store


def prepare_critic_params(params):
    """One-time parameter preprocessing (call ONCE, outside the per-step jit)."""
    (w1s, w1a, b1, wih, whh, bih, bhh, w2, b2) = params
    H = HIDDEN

    def reorder(w):  # gate blocks (i, f, g, o) -> (i, f, o, g) along last axis
        return jnp.concatenate(
            [w[..., :2 * H], w[..., 3 * H:4 * H], w[..., 2 * H:3 * H]], axis=-1)

    w_lstm = jnp.concatenate([reorder(wih), reorder(whh)], axis=0)   # [2H, 4H]
    b_lstm = reorder(bih + bhh)                                      # [1, 4H]
    vec = jnp.concatenate([b1,                                       # row 0: b1
                           w2.reshape(1, H),                         # row 1: w2^T
                           jnp.broadcast_to(b2, (1, H))],            # row 2: b2
                          axis=0)                                    # [3, H]
    return (w1s, w1a, w_lstm, b_lstm, vec)


@jax.jit
def critic_forward(state, action, h0, c0, prepped):
    """state: [B, T, Ds], action: [B, T, Da], h0/c0: [1, B, H] (float32).
    `prepped` comes from prepare_critic_params (one-time).
    Returns (q_value [B, T, 1], new_h [1, B, H], new_c [1, B, H])."""
    B, T, Ds = state.shape
    Da = action.shape[2]
    H = HIDDEN
    w1s, w1a, w_lstm, b_lstm, vec = prepped

    # Free contiguous views; no concatenation / HBM round-trip in the wrapper.
    xs2d = state.reshape(B * T, Ds)
    xa2d = action.reshape(B * T, Da)

    vmem = pl.BlockSpec(memory_space=pltpu.MemorySpace.VMEM)
    kernel = functools.partial(_critic_kernel, B=B, T=T)

    q2d, new_h, new_c = pl.pallas_call(
        kernel,
        out_shape=(
            jax.ShapeDtypeStruct((B, T), jnp.float32),               # q (lane-dense)
            jax.ShapeDtypeStruct((1, B, H), jnp.float32),            # new_h
            jax.ShapeDtypeStruct((1, B, H), jnp.float32),            # new_c
        ),
        in_specs=[vmem] * 9,
        out_specs=(vmem, vmem, vmem),
    )(xs2d, xa2d, h0, c0, w1s, w1a, w_lstm, b_lstm, vec)

    return q2d[:, :, None], new_h, new_c


def _reference(state, action, h0, c0, params):
    """Pure-JAX reference mirroring the PyTorch forward (original param layout)."""
    (w1s, w1a, b1, wih, whh, bih, bhh, w2, b2) = params
    H = HIDDEN
    x = jnp.concatenate([state, action], axis=2)
    w1 = jnp.concatenate([w1s, w1a], axis=0)
    x = jax.nn.relu(x @ w1 + b1[0])                    # [B, T, H]

    def step(carry, xt):
        h, c = carry
        gates = xt @ wih + bih[0] + h @ whh + bhh[0]
        i = jax.nn.sigmoid(gates[:, 0 * H:1 * H])
        f = jax.nn.sigmoid(gates[:, 1 * H:2 * H])
        g = jnp.tanh(gates[:, 2 * H:3 * H])
        o = jax.nn.sigmoid(gates[:, 3 * H:4 * H])
        c_new = f * c + i * g
        h_new = o * jnp.tanh(c_new)
        return (h_new, c_new), h_new

    (hT, cT), hs = lax.scan(step, (h0[0], c0[0]),
                            jnp.transpose(x, (1, 0, 2)))
    q = hs @ w2 + b2[0]                                # [T, B, 1]
    return jnp.transpose(q, (1, 0, 2)), hT[None], cT[None]


def _init_params(key, state_dim, action_dim):
    H = HIDDEN
    ks = jax.random.split(key, 9)
    scale = 0.1
    w1s = scale * jax.random.normal(ks[0], (state_dim, H), jnp.float32)
    w1a = scale * jax.random.normal(ks[1], (action_dim, H), jnp.float32)
    b1 = scale * jax.random.normal(ks[2], (1, H), jnp.float32)
    wih = scale * jax.random.normal(ks[3], (H, 4 * H), jnp.float32)
    whh = scale * jax.random.normal(ks[4], (H, 4 * H), jnp.float32)
    bih = scale * jax.random.normal(ks[5], (1, 4 * H), jnp.float32)
    bhh = scale * jax.random.normal(ks[6], (1, 4 * H), jnp.float32)
    w2 = scale * jax.random.normal(ks[7], (H, 1), jnp.float32)
    b2 = scale * jax.random.normal(ks[8], (1, 1), jnp.float32)
    return (w1s, w1a, b1, wih, whh, bih, bhh, w2, b2)


if __name__ == "__main__":
    B, T, STATE_DIM, ACTION_DIM = 2, 8, 6, 2

    key = jax.random.PRNGKey(0)
    k_s, k_a, k_p = jax.random.split(key, 3)

    state = jax.random.normal(k_s, (B, T, STATE_DIM), jnp.float32)
    action = jax.random.normal(k_a, (B, T, ACTION_DIM), jnp.float32)
    h0 = jnp.zeros((1, B, HIDDEN), jnp.float32)
    c0 = jnp.zeros((1, B, HIDDEN), jnp.float32)

    params = _init_params(k_p, STATE_DIM, ACTION_DIM)
    prepped = prepare_critic_params(params)   # one-time preprocessing

    q, new_h, new_c = critic_forward(state, action, h0, c0, prepped)
    jax.block_until_ready((q, new_h, new_c))

    q_ref, h_ref, c_ref = _reference(state, action, h0, c0, params)
    np.testing.assert_allclose(np.asarray(q), np.asarray(q_ref), atol=1e-4, rtol=1e-4)
    np.testing.assert_allclose(np.asarray(new_h), np.asarray(h_ref), atol=1e-4, rtol=1e-4)
    np.testing.assert_allclose(np.asarray(new_c), np.asarray(c_ref), atol=1e-4, rtol=1e-4)

    assert q.shape == (B, T, 1)
    assert new_h.shape == (1, B, HIDDEN)
    assert new_c.shape == (1, B, HIDDEN)

    print("KERNEL_OK")
</pallas_src>

<mosaic_0001>
module attributes {stable_mosaic.version = 11 : i64} {
  func.func @_critic_kernel(%arg0: memref<16x6xf32, #tpu.memory_space<vmem>>, %arg1: memref<16x2xf32, #tpu.memory_space<vmem>>, %arg2: memref<1x2x64xf32, #tpu.memory_space<vmem>>, %arg3: memref<1x2x64xf32, #tpu.memory_space<vmem>>, %arg4: memref<6x64xf32, #tpu.memory_space<vmem>>, %arg5: memref<2x64xf32, #tpu.memory_space<vmem>>, %arg6: memref<128x256xf32, #tpu.memory_space<vmem>>, %arg7: memref<1x256xf32, #tpu.memory_space<vmem>>, %arg8: memref<3x64xf32, #tpu.memory_space<vmem>>, %arg9: memref<2x8xf32, #tpu.memory_space<vmem>>, %arg10: memref<1x2x64xf32, #tpu.memory_space<vmem>>, %arg11: memref<1x2x64xf32, #tpu.memory_space<vmem>>) attributes {dimension_semantics = [], scalar_prefetch = 0 : i64, scratch_operands = 0 : i64, tpu.core_type = #tpu.core_type<tc>} {
    %c0 = arith.constant 0 : index
    %c0_0 = arith.constant 0 : index
    %0 = vector.load %arg0[%c0, %c0_0] : memref<16x6xf32, #tpu.memory_space<vmem>>, vector<16x6xf32>
    %c0_1 = arith.constant 0 : index
    %c0_2 = arith.constant 0 : index
    %1 = vector.load %arg4[%c0_1, %c0_2] : memref<6x64xf32, #tpu.memory_space<vmem>>, vector<6x64xf32>
    %cst = arith.constant dense<0.000000e+00> : vector<16x64xf32>
    %2 = tpu.matmul %0, %1, %cst {dimension_numbers = #tpu.dot_dimension_numbers<[1], [0], [0], [1], [0, 0, 1, 1], [], []>} : vector<16x6xf32>, vector<6x64xf32>, vector<16x64xf32> -> vector<16x64xf32>
    %c0_3 = arith.constant 0 : index
    %c0_4 = arith.constant 0 : index
    %3 = vector.load %arg1[%c0_3, %c0_4] : memref<16x2xf32, #tpu.memory_space<vmem>>, vector<16x2xf32>
    %c0_5 = arith.constant 0 : index
    %c0_6 = arith.constant 0 : index
    %4 = vector.load %arg5[%c0_5, %c0_6] : memref<2x64xf32, #tpu.memory_space<vmem>>, vector<2x64xf32>
    %cst_7 = arith.constant dense<0.000000e+00> : vector<16x64xf32>
    %5 = tpu.matmul %3, %4, %cst_7 {dimension_numbers = #tpu.dot_dimension_numbers<[1], [0], [0], [1], [0, 0, 1, 1], [], []>} : vector<16x2xf32>, vector<2x64xf32>, vector<16x64xf32> -> vector<16x64xf32>
    %6 = arith.addf %2, %5 : vector<16x64xf32>
    %c0_8 = arith.constant 0 : index
    %c0_9 = arith.constant 0 : index
    %7 = vector.load %arg8[%c0_8, %c0_9] : memref<3x64xf32, #tpu.memory_space<vmem>>, vector<1x64xf32>
    %8 = vector.broadcast %7 : vector<1x64xf32> to vector<16x64xf32>
    %9 = arith.addf %6, %8 : vector<16x64xf32>
    %cst_10 = arith.constant 0.000000e+00 : f32
    %10 = vector.broadcast %cst_10 : f32 to vector<16x64xf32>
    %11 = arith.maximumf %9, %10 : vector<16x64xf32>
    %c0_11 = arith.constant 0 : index
    %c0_12 = arith.constant 0 : index
    %12 = vector.load %arg6[%c0_11, %c0_12] : memref<128x256xf32, #tpu.memory_space<vmem>>, vector<64x256xf32>
    %cst_13 = arith.constant dense<0.000000e+00> : vector<16x256xf32>
    %13 = tpu.matmul %11, %12, %cst_13 {dimension_numbers = #tpu.dot_dimension_numbers<[1], [0], [0], [1], [0, 0, 1, 1], [], []>} : vector<16x64xf32>, vector<64x256xf32>, vector<16x256xf32> -> vector<16x256xf32>
    %c0_14 = arith.constant 0 : index
    %c0_15 = arith.constant 0 : index
    %14 = vector.load %arg7[%c0_14, %c0_15] : memref<1x256xf32, #tpu.memory_space<vmem>>, vector<1x256xf32>
    %15 = vector.broadcast %14 : vector<1x256xf32> to vector<16x256xf32>
    %16 = arith.addf %13, %15 : vector<16x256xf32>
    %17 = vector.shape_cast %16 : vector<16x256xf32> to vector<2x8x256xf32>
    %c64 = arith.constant 64 : index
    %c0_16 = arith.constant 0 : index
    %18 = vector.load %arg6[%c64, %c0_16] : memref<128x256xf32, #tpu.memory_space<vmem>>, vector<64x256xf32>
    %c0_17 = arith.constant 0 : index
    %c0_18 = arith.constant 0 : index
    %c0_19 = arith.constant 0 : index
    %19 = vector.load %arg2[%c0_17, %c0_18, %c0_19] : memref<1x2x64xf32, #tpu.memory_space<vmem>>, vector<1x2x64xf32>
    %20 = vector.shape_cast %19 : vector<1x2x64xf32> to vector<2x64xf32>
    %c0_20 = arith.constant 0 : index
    %c0_21 = arith.constant 0 : index
    %c0_22 = arith.constant 0 : index
    %21 = vector.load %arg3[%c0_20, %c0_21, %c0_22] : memref<1x2x64xf32, #tpu.memory_space<vmem>>, vector<1x2x64xf32>
    %22 = vector.shape_cast %21 : vector<1x2x64xf32> to vector<2x64xf32>
    %23 = vector.extract_strided_slice %17 {offsets = [0, 0, 0], sizes = [2, 1, 256], strides = [1, 1, 1]} : vector<2x8x256xf32> to vector<2x1x256xf32>
    %24 = vector.shape_cast %23 : vector<2x1x256xf32> to vector<2x256xf32>
    %cst_23 = arith.constant dense<0.000000e+00> : vector<2x256xf32>
    %25 = tpu.matmul %20, %18, %cst_23 {dimension_numbers = #tpu.dot_dimension_numbers<[1], [0], [0], [1], [0, 0, 1, 1], [], []>} : vector<2x64xf32>, vector<64x256xf32>, vector<2x256xf32> -> vector<2x256xf32>
    %26 = arith.addf %24, %25 : vector<2x256xf32>
    %27 = vector.extract_strided_slice %26 {offsets = [0, 0], sizes = [2, 192], strides = [1, 1]} : vector<2x256xf32> to vector<2x192xf32>
    %cst_24 = arith.constant 5.000000e-01 : f32
    %28 = vector.broadcast %cst_24 : f32 to vector<2x192xf32>
    %29 = arith.mulf %28, %27 : vector<2x192xf32>
    %30 = math.tanh %29 : vector<2x192xf32>
    %cst_25 = arith.constant 5.000000e-01 : f32
    %31 = vector.broadcast %cst_25 : f32 to vector<2x192xf32>
    %32 = arith.mulf %31, %30 : vector<2x192xf32>
    %cst_26 = arith.constant 5.000000e-01 : f32
    %33 = vector.broadcast %cst_26 : f32 to vector<2x192xf32>
    %34 = arith.addf %32, %33 : vector<2x192xf32>
    %35 = vector.extract_strided_slice %26 {offsets = [0, 192], sizes = [2, 64], strides = [1, 1]} : vector<2x256xf32> to vector<2x64xf32>
    %36 = math.tanh %35 : vector<2x64xf32>
    %37 = vector.extract_strided_slice %34 {offsets = [0, 0], sizes = [2, 64], strides = [1, 1]} : vector<2x192xf32> to vector<2x64xf32>
    %38 = vector.extract_strided_slice %34 {offsets = [0, 64], sizes = [2, 64], strides = [1, 1]} : vector<2x192xf32> to vector<2x64xf32>
    %39 = vector.extract_strided_slice %34 {offsets = [0, 128], sizes = [2, 64], strides = [1, 1]} : vector<2x192xf32> to vector<2x64xf32>
    %40 = arith.mulf %38, %22 : vector<2x64xf32>
    %41 = arith.mulf %37, %36 : vector<2x64xf32>
    %42 = arith.addf %40, %41 : vector<2x64xf32>
    %43 = math.tanh %42 : vector<2x64xf32>
    %44 = arith.mulf %39, %43 : vector<2x64xf32>
    %45 = vector.extract_strided_slice %17 {offsets = [0, 1, 0], sizes = [2, 1, 256], strides = [1, 1, 1]} : vector<2x8x256xf32> to vector<2x1x256xf32>
    %46 = vector.shape_cast %45 : vector<2x1x256xf32> to vector<2x256xf32>
    %cst_27 = arith.constant dense<0.000000e+00> : vector<2x256xf32>
    %47 = tpu.matmul %44, %18, %cst_27 {dimension_numbers = #tpu.dot_dimension_numbers<[1], [0], [0], [1], [0, 0, 1, 1], [], []>} : vector<2x64xf32>, vector<64x256xf32>, vector<2x256xf32> -> vector<2x256xf32>
    %48 = arith.addf %46, %47 : vector<2x256xf32>
    %49 = vector.extract_strided_slice %48 {offsets = [0, 0], sizes = [2, 192], strides = [1, 1]} : vector<2x256xf32> to vector<2x192xf32>
    %cst_28 = arith.constant 5.000000e-01 : f32
    %50 = vector.broadcast %cst_28 : f32 to vector<2x192xf32>
    %51 = arith.mulf %50, %49 : vector<2x192xf32>
    %52 = math.tanh %51 : vector<2x192xf32>
    %cst_29 = arith.constant 5.000000e-01 : f32
    %53 = vector.broadcast %cst_29 : f32 to vector<2x192xf32>
    %54 = arith.mulf %53, %52 : vector<2x192xf32>
    %cst_30 = arith.constant 5.000000e-01 : f32
    %55 = vector.broadcast %cst_30 : f32 to vector<2x192xf32>
    %56 = arith.addf %54, %55 : vector<2x192xf32>
    %57 = vector.extract_strided_slice %48 {offsets = [0, 192], sizes = [2, 64], strides = [1, 1]} : vector<2x256xf32> to vector<2x64xf32>
    %58 = math.tanh %57 : vector<2x64xf32>
    %59 = vector.extract_strided_slice %56 {offsets = [0, 0], sizes = [2, 64], strides = [1, 1]} : vector<2x192xf32> to vector<2x64xf32>
    %60 = vector.extract_strided_slice %56 {offsets = [0, 64], sizes = [2, 64], strides = [1, 1]} : vector<2x192xf32> to vector<2x64xf32>
    %61 = vector.extract_strided_slice %56 {offsets = [0, 128], sizes = [2, 64], strides = [1, 1]} : vector<2x192xf32> to vector<2x64xf32>
    %62 = arith.mulf %60, %42 : vector<2x64xf32>
    %63 = arith.mulf %59, %58 : vector<2x64xf32>
    %64 = arith.addf %62, %63 : vector<2x64xf32>
    %65 = math.tanh %64 : vector<2x64xf32>
    %66 = arith.mulf %61, %65 : vector<2x64xf32>
    %67 = vector.extract_strided_slice %17 {offsets = [0, 2, 0], sizes = [2, 1, 256], strides = [1, 1, 1]} : vector<2x8x256xf32> to vector<2x1x256xf32>
    %68 = vector.shape_cast %67 : vector<2x1x256xf32> to vector<2x256xf32>
    %cst_31 = arith.constant dense<0.000000e+00> : vector<2x256xf32>
    %69 = tpu.matmul %66, %18, %cst_31 {dimension_numbers = #tpu.dot_dimension_numbers<[1], [0], [0], [1], [0, 0, 1, 1], [], []>} : vector<2x64xf32>, vector<64x256xf32>, vector<2x256xf32> -> vector<2x256xf32>
    %70 = arith.addf %68, %69 : vector<2x256xf32>
    %71 = vector.extract_strided_slice %70 {offsets = [0, 0], sizes = [2, 192], strides = [1, 1]} : vector<2x256xf32> to vector<2x192xf32>
    %cst_32 = arith.constant 5.000000e-01 : f32
    %72 = vector.broadcast %cst_32 : f32 to vector<2x192xf32>
    %73 = arith.mulf %72, %71 : vector<2x192xf32>
    %74 = math.tanh %73 : vector<2x192xf32>
    %cst_33 = arith.constant 5.000000e-01 : f32
    %75 = vector.broadcast %cst_33 : f32 to vector<2x192xf32>
    %76 = arith.mulf %75, %74 : vector<2x192xf32>
    %cst_34 = arith.constant 5.000000e-01 : f32
    %77 = vector.broadcast %cst_34 : f32 to vector<2x192xf32>
    %78 = arith.addf %76, %77 : vector<2x192xf32>
    %79 = vector.extract_strided_slice %70 {offsets = [0, 192], sizes = [2, 64], strides = [1, 1]} : vector<2x256xf32> to vector<2x64xf32>
    %80 = math.tanh %79 : vector<2x64xf32>
    %81 = vector.extract_strided_slice %78 {offsets = [0, 0], sizes = [2, 64], strides = [1, 1]} : vector<2x192xf32> to vector<2x64xf32>
    %82 = vector.extract_strided_slice %78 {offsets = [0, 64], sizes = [2, 64], strides = [1, 1]} : vector<2x192xf32> to vector<2x64xf32>
    %83 = vector.extract_strided_slice %78 {offsets = [0, 128], sizes = [2, 64], strides = [1, 1]} : vector<2x192xf32> to vector<2x64xf32>
    %84 = arith.mulf %82, %64 : vector<2x64xf32>
    %85 = arith.mulf %81, %80 : vector<2x64xf32>
    %86 = arith.addf %84, %85 : vector<2x64xf32>
    %87 = math.tanh %86 : vector<2x64xf32>
    %88 = arith.mulf %83, %87 : vector<2x64xf32>
    %89 = vector.extract_strided_slice %17 {offsets = [0, 3, 0], sizes = [2, 1, 256], strides = [1, 1, 1]} : vector<2x8x256xf32> to vector<2x1x256xf32>
    %90 = vector.shape_cast %89 : vector<2x1x256xf32> to vector<2x256xf32>
    %cst_35 = arith.constant dense<0.000000e+00> : vector<2x256xf32>
    %91 = tpu.matmul %88, %18, %cst_35 {dimension_numbers = #tpu.dot_dimension_numbers<[1], [0], [0], [1], [0, 0, 1, 1], [], []>} : vector<2x64xf32>, vector<64x256xf32>, vector<2x256xf32> -> vector<2x256xf32>
    %92 = arith.addf %90, %91 : vector<2x256xf32>
    %93 = vector.extract_strided_slice %92 {offsets = [0, 0], sizes = [2, 192], strides = [1, 1]} : vector<2x256xf32> to vector<2x192xf32>
    %cst_36 = arith.constant 5.000000e-01 : f32
    %94 = vector.broadcast %cst_36 : f32 to vector<2x192xf32>
    %95 = arith.mulf %94, %93 : vector<2x192xf32>
    %96 = math.tanh %95 : vector<2x192xf32>
    %cst_37 = arith.constant 5.000000e-01 : f32
    %97 = vector.broadcast %cst_37 : f32 to vector<2x192xf32>
    %98 = arith.mulf %97, %96 : vector<2x192xf32>
    %cst_38 = arith.constant 5.000000e-01 : f32
    %99 = vector.broadcast %cst_38 : f32 to vector<2x192xf32>
    %100 = arith.addf %98, %99 : vector<2x192xf32>
    %101 = vector.extract_strided_slice %92 {offsets = [0, 192], sizes = [2, 64], strides = [1, 1]} : vector<2x256xf32> to vector<2x64xf32>
    %102 = math.tanh %101 : vector<2x64xf32>
    %103 = vector.extract_strided_slice %100 {offsets = [0, 0], sizes = [2, 64], strides = [1, 1]} : vector<2x192xf32> to vector<2x64xf32>
    %104 = vector.extract_strided_slice %100 {offsets = [0, 64], sizes = [2, 64], strides = [1, 1]} : vector<2x192xf32> to vector<2x64xf32>
    %105 = vector.extract_strided_slice %100 {offsets = [0, 128], sizes = [2, 64], strides = [1, 1]} : vector<2x192xf32> to vector<2x64xf32>
    %106 = arith.mulf %104, %86 : vector<2x64xf32>
    %107 = arith.mulf %103, %102 : vector<2x64xf32>
    %108 = arith.addf %106, %107 : vector<2x64xf32>
    %109 = math.tanh %108 : vector<2x64xf32>
    %110 = arith.mulf %105, %109 : vector<2x64xf32>
    %111 = vector.extract_strided_slice %17 {offsets = [0, 4, 0], sizes = [2, 1, 256], strides = [1, 1, 1]} : vector<2x8x256xf32> to vector<2x1x256xf32>
    %112 = vector.shape_cast %111 : vector<2x1x256xf32> to vector<2x256xf32>
    %cst_39 = arith.constant dense<0.000000e+00> : vector<2x256xf32>
    %113 = tpu.matmul %110, %18, %cst_39 {dimension_numbers = #tpu.dot_dimension_numbers<[1], [0], [0], [1], [0, 0, 1, 1], [], []>} : vector<2x64xf32>, vector<64x256xf32>, vector<2x256xf32> -> vector<2x256xf32>
    %114 = arith.addf %112, %113 : vector<2x256xf32>
    %115 = vector.extract_strided_slice %114 {offsets = [0, 0], sizes = [2, 192], strides = [1, 1]} : vector<2x256xf32> to vector<2x192xf32>
    %cst_40 = arith.constant 5.000000e-01 : f32
    %116 = vector.broadcast %cst_40 : f32 to vector<2x192xf32>
    %117 = arith.mulf %116, %115 : vector<2x192xf32>
    %118 = math.tanh %117 : vector<2x192xf32>
    %cst_41 = arith.constant 5.000000e-01 : f32
    %119 = vector.broadcast %cst_41 : f32 to vector<2x192xf32>
    %120 = arith.mulf %119, %118 : vector<2x192xf32>
    %cst_42 = arith.constant 5.000000e-01 : f32
    %121 = vector.broadcast %cst_42 : f32 to vector<2x192xf32>
    %122 = arith.addf %120, %121 : vector<2x192xf32>
    %123 = vector.extract_strided_slice %114 {offsets = [0, 192], sizes = [2, 64], strides = [1, 1]} : vector<2x256xf32> to vector<2x64xf32>
    %124 = math.tanh %123 : vector<2x64xf32>
    %125 = vector.extract_strided_slice %122 {offsets = [0, 0], sizes = [2, 64], strides = [1, 1]} : vector<2x192xf32> to vector<2x64xf32>
    %126 = vector.extract_strided_slice %122 {offsets = [0, 64], sizes = [2, 64], strides = [1, 1]} : vector<2x192xf32> to vector<2x64xf32>
    %127 = vector.extract_strided_slice %122 {offsets = [0, 128], sizes = [2, 64], strides = [1, 1]} : vector<2x192xf32> to vector<2x64xf32>
    %128 = arith.mulf %126, %108 : vector<2x64xf32>
    %129 = arith.mulf %125, %124 : vector<2x64xf32>
    %130 = arith.addf %128, %129 : vector<2x64xf32>
    %131 = math.tanh %130 : vector<2x64xf32>
    %132 = arith.mulf %127, %131 : vector<2x64xf32>
    %133 = vector.extract_strided_slice %17 {offsets = [0, 5, 0], sizes = [2, 1, 256], strides = [1, 1, 1]} : vector<2x8x256xf32> to vector<2x1x256xf32>
    %134 = vector.shape_cast %133 : vector<2x1x256xf32> to vector<2x256xf32>
    %cst_43 = arith.constant dense<0.000000e+00> : vector<2x256xf32>
    %135 = tpu.matmul %132, %18, %cst_43 {dimension_numbers = #tpu.dot_dimension_numbers<[1], [0], [0], [1], [0, 0, 1, 1], [], []>} : vector<2x64xf32>, vector<64x256xf32>, vector<2x256xf32> -> vector<2x256xf32>
    %136 = arith.addf %134, %135 : vector<2x256xf32>
    %137 = vector.extract_strided_slice %136 {offsets = [0, 0], sizes = [2, 192], strides = [1, 1]} : vector<2x256xf32> to vector<2x192xf32>
    %cst_44 = arith.constant 5.000000e-01 : f32
    %138 = vector.broadcast %cst_44 : f32 to vector<2x192xf32>
    %139 = arith.mulf %138, %137 : vector<2x192xf32>
    %140 = math.tanh %139 : vector<2x192xf32>
    %cst_45 = arith.constant 5.000000e-01 : f32
    %141 = vector.broadcast %cst_45 : f32 to vector<2x192xf32>
    %142 = arith.mulf %141, %140 : vector<2x192xf32>
    %cst_46 = arith.constant 5.000000e-01 : f32
    %143 = vector.broadcast %cst_46 : f32 to vector<2x192xf32>
    %144 = arith.addf %142, %143 : vector<2x192xf32>
    %145 = vector.extract_strided_slice %136 {offsets = [0, 192], sizes = [2, 64], strides = [1, 1]} : vector<2x256xf32> to vector<2x64xf32>
    %146 = math.tanh %145 : vector<2x64xf32>
    %147 = vector.extract_strided_slice %144 {offsets = [0, 0], sizes = [2, 64], strides = [1, 1]} : vector<2x192xf32> to vector<2x64xf32>
    %148 = vector.extract_strided_slice %144 {offsets = [0, 64], sizes = [2, 64], strides = [1, 1]} : vector<2x192xf32> to vector<2x64xf32>
    %149 = vector.extract_strided_slice %144 {offsets = [0, 128], sizes = [2, 64], strides = [1, 1]} : vector<2x192xf32> to vector<2x64xf32>
    %150 = arith.mulf %148, %130 : vector<2x64xf32>
    %151 = arith.mulf %147, %146 : vector<2x64xf32>
    %152 = arith.addf %150, %151 : vector<2x64xf32>
    %153 = math.tanh %152 : vector<2x64xf32>
    %154 = arith.mulf %149, %153 : vector<2x64xf32>
    %155 = vector.extract_strided_slice %17 {offsets = [0, 6, 0], sizes = [2, 1, 256], strides = [1, 1, 1]} : vector<2x8x256xf32> to vector<2x1x256xf32>
    %156 = vector.shape_cast %155 : vector<2x1x256xf32> to vector<2x256xf32>
    %cst_47 = arith.constant dense<0.000000e+00> : vector<2x256xf32>
    %157 = tpu.matmul %154, %18, %cst_47 {dimension_numbers = #tpu.dot_dimension_numbers<[1], [0], [0], [1], [0, 0, 1, 1], [], []>} : vector<2x64xf32>, vector<64x256xf32>, vector<2x256xf32> -> vector<2x256xf32>
    %158 = arith.addf %156, %157 : vector<2x256xf32>
    %159 = vector.extract_strided_slice %158 {offsets = [0, 0], sizes = [2, 192], strides = [1, 1]} : vector<2x256xf32> to vector<2x192xf32>
    %cst_48 = arith.constant 5.000000e-01 : f32
    %160 = vector.broadcast %cst_48 : f32 to vector<2x192xf32>
    %161 = arith.mulf %160, %159 : vector<2x192xf32>
    %162 = math.tanh %161 : vector<2x192xf32>
    %cst_49 = arith.constant 5.000000e-01 : f32
    %163 = vector.broadcast %cst_49 : f32 to vector<2x192xf32>
    %164 = arith.mulf %163, %162 : vector<2x192xf32>
    %cst_50 = arith.constant 5.000000e-01 : f32
    %165 = vector.broadcast %cst_50 : f32 to vector<2x192xf32>
    %166 = arith.addf %164, %165 : vector<2x192xf32>
    %167 = vector.extract_strided_slice %158 {offsets = [0, 192], sizes = [2, 64], strides = [1, 1]} : vector<2x256xf32> to vector<2x64xf32>
    %168 = math.tanh %167 : vector<2x64xf32>
    %169 = vector.extract_strided_slice %166 {offsets = [0, 0], sizes = [2, 64], strides = [1, 1]} : vector<2x192xf32> to vector<2x64xf32>
    %170 = vector.extract_strided_slice %166 {offsets = [0, 64], sizes = [2, 64], strides = [1, 1]} : vector<2x192xf32> to vector<2x64xf32>
    %171 = vector.extract_strided_slice %166 {offsets = [0, 128], sizes = [2, 64], strides = [1, 1]} : vector<2x192xf32> to vector<2x64xf32>
    %172 = arith.mulf %170, %152 : vector<2x64xf32>
    %173 = arith.mulf %169, %168 : vector<2x64xf32>
    %174 = arith.addf %172, %173 : vector<2x64xf32>
    %175 = math.tanh %174 : vector<2x64xf32>
    %176 = arith.mulf %171, %175 : vector<2x64xf32>
    %177 = vector.extract_strided_slice %17 {offsets = [0, 7, 0], sizes = [2, 1, 256], strides = [1, 1, 1]} : vector<2x8x256xf32> to vector<2x1x256xf32>
    %178 = vector.shape_cast %177 : vector<2x1x256xf32> to vector<2x256xf32>
    %cst_51 = arith.constant dense<0.000000e+00> : vector<2x256xf32>
    %179 = tpu.matmul %176, %18, %cst_51 {dimension_numbers = #tpu.dot_dimension_numbers<[1], [0], [0], [1], [0, 0, 1, 1], [], []>} : vector<2x64xf32>, vector<64x256xf32>, vector<2x256xf32> -> vector<2x256xf32>
    %180 = arith.addf %178, %179 : vector<2x256xf32>
    %181 = vector.extract_strided_slice %180 {offsets = [0, 0], sizes = [2, 192], strides = [1, 1]} : vector<2x256xf32> to vector<2x192xf32>
    %cst_52 = arith.constant 5.000000e-01 : f32
    %182 = vector.broadcast %cst_52 : f32 to vector<2x192xf32>
    %183 = arith.mulf %182, %181 : vector<2x192xf32>
    %184 = math.tanh %183 : vector<2x192xf32>
    %cst_53 = arith.constant 5.000000e-01 : f32
    %185 = vector.broadcast %cst_53 : f32 to vector<2x192xf32>
    %186 = arith.mulf %185, %184 : vector<2x192xf32>
    %cst_54 = arith.constant 5.000000e-01 : f32
    %187 = vector.broadcast %cst_54 : f32 to vector<2x192xf32>
    %188 = arith.addf %186, %187 : vector<2x192xf32>
    %189 = vector.extract_strided_slice %180 {offsets = [0, 192], sizes = [2, 64], strides = [1, 1]} : vector<2x256xf32> to vector<2x64xf32>
    %190 = math.tanh %189 : vector<2x64xf32>
    %191 = vector.extract_strided_slice %188 {offsets = [0, 0], sizes = [2, 64], strides = [1, 1]} : vector<2x192xf32> to vector<2x64xf32>
    %192 = vector.extract_strided_slice %188 {offsets = [0, 64], sizes = [2, 64], strides = [1, 1]} : vector<2x192xf32> to vector<2x64xf32>
    %193 = vector.extract_strided_slice %188 {offsets = [0, 128], sizes = [2, 64], strides = [1, 1]} : vector<2x192xf32> to vector<2x64xf32>
    %194 = arith.mulf %192, %174 : vector<2x64xf32>
    %195 = arith.mulf %191, %190 : vector<2x64xf32>
    %196 = arith.addf %194, %195 : vector<2x64xf32>
    %197 = math.tanh %196 : vector<2x64xf32>
    %198 = arith.mulf %193, %197 : vector<2x64xf32>
    %c0_55 = arith.constant 0 : index
    %c0_56 = arith.constant 0 : index
    %c0_57 = arith.constant 0 : index
    %199 = vector.load %arg10[%c0_55, %c0_56, %c0_57] : memref<1x2x64xf32, #tpu.memory_space<vmem>>, vector<1x2x64xf32>
    %200 = vector.shape_cast %199 : vector<1x2x64xf32> to vector<2x64xf32>
    %201 = vector.shape_cast %198 : vector<2x64xf32> to vector<1x2x64xf32>
    tpu.vector_store %arg10[%c0_55, %c0_56, %c0_57], %201 {strides = array<i32>} : memref<1x2x64xf32, #tpu.memory_space<vmem>>, vector<1x2x64xf32>,
    %c0_58 = arith.constant 0 : index
    %c0_59 = arith.constant 0 : index
    %c0_60 = arith.constant 0 : index
    %202 = vector.load %arg11[%c0_58, %c0_59, %c0_60] : memref<1x2x64xf32, #tpu.memory_space<vmem>>, vector<1x2x64xf32>
    %203 = vector.shape_cast %202 : vector<1x2x64xf32> to vector<2x64xf32>
    %204 = vector.shape_cast %196 : vector<2x64xf32> to vector<1x2x64xf32>
    tpu.vector_store %arg11[%c0_58, %c0_59, %c0_60], %204 {strides = array<i32>} : memref<1x2x64xf32, #tpu.memory_space<vmem>>, vector<1x2x64xf32>,
    %c1 = arith.constant 1 : index
    %c0_61 = arith.constant 0 : index
    %205 = vector.load %arg8[%c1, %c0_61] : memref<3x64xf32, #tpu.memory_space<vmem>>, vector<1x64xf32>
    %c2 = arith.constant 2 : index
    %c0_62 = arith.constant 0 : index
    %206 = vector.load %arg8[%c2, %c0_62] : memref<3x64xf32, #tpu.memory_space<vmem>>, vector<1x1xf32>
    %207 = vector.broadcast %205 : vector<1x64xf32> to vector<2x64xf32>
    %208 = arith.mulf %44, %207 : vector<2x64xf32>
    %cst_63 = arith.constant dense<0.000000e+00> : vector<2xf32>
    %209 = vector.multi_reduction <add>, %208, %cst_63 [1] : vector<2x64xf32> to vector<2xf32>
    %210 = vector.shape_cast %209 : vector<2xf32> to vector<2x1xf32>
    %211 = vector.broadcast %205 : vector<1x64xf32> to vector<2x64xf32>
    %212 = arith.mulf %66, %211 : vector<2x64xf32>
    %cst_64 = arith.constant dense<0.000000e+00> : vector<2xf32>
    %213 = vector.multi_reduction <add>, %212, %cst_64 [1] : vector<2x64xf32> to vector<2xf32>
    %214 = vector.shape_cast %213 : vector<2xf32> to vector<2x1xf32>
    %215 = vector.broadcast %205 : vector<1x64xf32> to vector<2x64xf32>
    %216 = arith.mulf %88, %215 : vector<2x64xf32>
    %cst_65 = arith.constant dense<0.000000e+00> : vector<2xf32>
    %217 = vector.multi_reduction <add>, %216, %cst_65 [1] : vector<2x64xf32> to vector<2xf32>
    %218 = vector.shape_cast %217 : vector<2xf32> to vector<2x1xf32>
    %219 = vector.broadcast %205 : vector<1x64xf32> to vector<2x64xf32>
    %220 = arith.mulf %110, %219 : vector<2x64xf32>
    %cst_66 = arith.constant dense<0.000000e+00> : vector<2xf32>
    %221 = vector.multi_reduction <add>, %220, %cst_66 [1] : vector<2x64xf32> to vector<2xf32>
    %222 = vector.shape_cast %221 : vector<2xf32> to vector<2x1xf32>
    %223 = vector.broadcast %205 : vector<1x64xf32> to vector<2x64xf32>
    %224 = arith.mulf %132, %223 : vector<2x64xf32>
    %cst_67 = arith.constant dense<0.000000e+00> : vector<2xf32>
    %225 = vector.multi_reduction <add>, %224, %cst_67 [1] : vector<2x64xf32> to vector<2xf32>
    %226 = vector.shape_cast %225 : vector<2xf32> to vector<2x1xf32>
    %227 = vector.broadcast %205 : vector<1x64xf32> to vector<2x64xf32>
    %228 = arith.mulf %154, %227 : vector<2x64xf32>
    %cst_68 = arith.constant dense<0.000000e+00> : vector<2xf32>
    %229 = vector.multi_reduction <add>, %228, %cst_68 [1] : vector<2x64xf32> to vector<2xf32>
    %230 = vector.shape_cast %229 : vector<2xf32> to vector<2x1xf32>
    %231 = vector.broadcast %205 : vector<1x64xf32> to vector<2x64xf32>
    %232 = arith.mulf %176, %231 : vector<2x64xf32>
    %cst_69 = arith.constant dense<0.000000e+00> : vector<2xf32>
    %233 = vector.multi_reduction <add>, %232, %cst_69 [1] : vector<2x64xf32> to vector<2xf32>
    %234 = vector.shape_cast %233 : vector<2xf32> to vector<2x1xf32>
    %235 = vector.broadcast %205 : vector<1x64xf32> to vector<2x64xf32>
    %236 = arith.mulf %198, %235 : vector<2x64xf32>
    %cst_70 = arith.constant dense<0.000000e+00> : vector<2xf32>
    %237 = vector.multi_reduction <add>, %236, %cst_70 [1] : vector<2x64xf32> to vector<2xf32>
    %238 = vector.shape_cast %237 : vector<2xf32> to vector<2x1xf32>
    %239 = tpu.concatenate %210, %214, %218, %222, %226, %230, %234, %238 in 1 : vector<2x1xf32>, vector<2x1xf32>, vector<2x1xf32>, vector<2x1xf32>, vector<2x1xf32>, vector<2x1xf32>, vector<2x1xf32>, vector<2x1xf32> -> vector<2x8xf32>
    %240 = vector.broadcast %206 : vector<1x1xf32> to vector<2x8xf32>
    %241 = arith.addf %239, %240 : vector<2x8xf32>
    %c0_71 = arith.constant 0 : index
    %c0_72 = arith.constant 0 : index
    %242 = vector.load %arg9[%c0_71, %c0_72] : memref<2x8xf32, #tpu.memory_space<vmem>>, vector<2x8xf32>
    tpu.vector_store %arg9[%c0_71, %c0_72], %241 {strides = array<i32>} : memref<2x8xf32, #tpu.memory_space<vmem>>, vector<2x8xf32>,
    return
  }
}

</mosaic_0001>

<llo_original>
// kernel: critic_forward.1
$region0: #{critic_forward.1}
  #allocation0 [shape = 'u32[]', space=smem, size = 0x4, offset = 0x4, fixed_abs, tag = 'smem constant byte address 0x4 - core index']
  #allocation1 [shape = 'u32[144,128]{1,0:T(1,128)}', space=vmem, size = 0x12000, scoped, tag = 'internal scratch']
  %s0 = inlined_call_operand.vmem [shape: f32[16,6], index: 0, kind: input, shape index: {}]
  %s1 = inlined_call_operand.vmem [shape: f32[16,2], index: 1, kind: input, shape index: {}]
  %s2 = inlined_call_operand.vmem [shape: f32[1,2,64], index: 2, kind: input, shape index: {}]
  %s3 = inlined_call_operand.vmem [shape: f32[1,2,64], index: 3, kind: input, shape index: {}]
  %s4 = inlined_call_operand.vmem [shape: f32[6,64], index: 4, kind: input, shape index: {}]
  %s5 = inlined_call_operand.vmem [shape: f32[2,64], index: 5, kind: input, shape index: {}]
  %s6 = inlined_call_operand.hbm [shape: f32[128,256], index: 6, kind: input, shape index: {}]
  %s7 = inlined_call_operand.vmem [shape: f32[1,256], index: 7, kind: input, shape index: {}]
  %s8 = inlined_call_operand.vmem [shape: f32[3,64], index: 8, kind: input, shape index: {}]
  %s9 = inlined_call_operand.hbm [shape: f32[2,8], index: 9, kind: output, shape index: {0}]
  %s10 = inlined_call_operand.hbm [shape: f32[1,2,64], index: 10, kind: output, shape index: {1}]
  %s11 = inlined_call_operand.hbm [shape: f32[1,2,64], index: 11, kind: output, shape index: {2}]
  %12 = xla_tuple %s9, %s10, %s11
  %s13 = sld [smem:[#allocation0]]
  $region66: #{critic_forward.1} parent=0
    _
  %s15 = ssub.s32 1, %s13
  %s16 = scalar_select 0, %s15, %s13
  $region1: #{critic_forward.1} parent=0
    #allocation2 [shape = 'u8[131072]{0}', space=vmem, size = 0x20000, scoped, tag = 'input window, operand 6, single buffered']
    #allocation3 [shape = 's32[1]{0}', space=sflag, size = 0x4, scoped, tag = 'scoped memory for critic_forward.1']
    #allocation4 [shape = 's32[1]{0}', space=sflag, size = 0x4, scoped, tag = 'scoped memory for critic_forward.1']
    #allocation5 [shape = 'u8[1024]{0}', space=vmem, size = 0x400, scoped, tag = 'output window, operand 0, single buffered']
    #allocation6 [shape = 'u8[1024]{0}', space=vmem, size = 0x400, scoped, tag = 'output window, operand 1, single buffered']
    #allocation7 [shape = 's32[1]{0}', space=sflag, size = 0x4, scoped, tag = 'scoped memory for critic_forward.1']
    #allocation8 [shape = 'u8[1024]{0}', space=vmem, size = 0x400, scoped, tag = 'output window, operand 2, single buffered']
    %17 = vsyncpa [#allocation3], 0
    %18 = vsyncpa [#allocation4], 0
    %19 = vsyncpa [#allocation7], 0
    // Predicated region
    $region2: #{critic_forward.1} parent=1 // pred_check
      _
    $region3: #{critic_forward.1} parent=1 // pred_check_branch
      %21 = sbr.rel (0) target = $region5
    $region4: #{critic_forward.1} parent=1 // pred_region
      _
    $region5: #{critic_forward.1} parent=1 // pred_fallthru
      _
    // Predicated region
    $region6: #{critic_forward.1} parent=1 // pred_check
      _
    $region7: #{critic_forward.1} parent=1 // pred_check_branch
      %23 = sbr.rel (0) target = $region9
    $region8: #{critic_forward.1} parent=1 // pred_region
      _
    $region9: #{critic_forward.1} parent=1 // pred_fallthru
      _
    // Predicated region
    $region10: #{critic_forward.1} parent=1 // pred_check
      _
    $region11: #{critic_forward.1} parent=1 // pred_check_branch
      %25 = sbr.rel (0) target = $region13
    $region12: #{critic_forward.1} parent=1 // pred_region
      _
    $region13: #{critic_forward.1} parent=1 // pred_fallthru
      _
    // Predicated region
    $region14: #{critic_forward.1} parent=1 // pred_check
      _
    $region15: #{critic_forward.1} parent=1 // pred_check_branch
      %27 = sbr.rel (0) target = $region17
    $region16: #{critic_forward.1} parent=1 // pred_region
      _
    $region17: #{critic_forward.1} parent=1 // pred_fallthru
      _
    // Predicated region
    $region18: #{critic_forward.1} parent=1 // pred_check
      _
    $region19: #{critic_forward.1} parent=1 // pred_check_branch
      %29 = sbr.rel (0) target = $region21
    $region20: #{critic_forward.1} parent=1 // pred_region
      _
    $region21: #{critic_forward.1} parent=1 // pred_fallthru
      _
    // Predicated region
    $region22: #{critic_forward.1} parent=1 // pred_check
      _
    $region23: #{critic_forward.1} parent=1 // pred_check_branch
      %31 = sbr.rel (0) target = $region25
    $region24: #{critic_forward.1} parent=1 // pred_region
      _
    $region25: #{critic_forward.1} parent=1 // pred_fallthru
      _
    // Predicated region
    $region26: #{critic_forward.1} parent=1 // pred_check
      _
    $region27: #{critic_forward.1} parent=1 // pred_check_branch
      %33 = sbr.rel (0) target = $region29
    $region28: #{critic_forward.1} parent=1 // pred_region
      %s35 = ssub.s32 4096, 4096
      %36 = vsyncadd [#allocation3], %s35
      %s37 = sshll.u32 [#allocation2], 4
      %s38 = int_to_ptr.vmem [resolvable:$true] %s37
      %43 = dma.hbm_to_vmem [thread:$0]  %s6, 4096, %s38, [#allocation3], 256, 256, 16
    $region29: #{critic_forward.1} parent=1 // pred_fallthru
      _
    // Predicated region
    $region30: #{critic_forward.1} parent=1 // pred_check
      _
    $region31: #{critic_forward.1} parent=1 // pred_check_branch
      %45 = sbr.rel (0) target = $region33
    $region32: #{critic_forward.1} parent=1 // pred_region
      _
    $region33: #{critic_forward.1} parent=1 // pred_fallthru
      _
    // Predicated region
    $region34: #{critic_forward.1} parent=1 // pred_check
      _
    $region35: #{critic_forward.1} parent=1 // pred_check_branch
      %47 = sbr.rel (0) target = $region37
    $region36: #{critic_forward.1} parent=1 // pred_region
      _
    $region37: #{critic_forward.1} parent=1 // pred_fallthru
      _
    // Predicated region
    $region38: #{critic_forward.1} parent=1 // pred_check
      _
    $region39: #{critic_forward.1} parent=1 // pred_check_branch
      %49 = sbr.rel (0) target = $region41
    $region40: #{critic_forward.1} parent=1 // pred_region
      %50 = dma.done [#allocation3], 4096
    $region41: #{critic_forward.1} parent=1 // pred_fallthru
      _
    %v51 = vld [vmem:[%s0] sm:$0xff]
    %v52 = vld [vmem:[%s0 + $0x8] sm:$0xff]
    %v53 = vld [vmem:[%s4] sm:$0x3f]
    %v54 = vld [vmem:[%s1] sm:$0xff]
    %v55 = vld [vmem:[%s1 + $0x8] sm:$0xff]
    %v56 = vld [vmem:[%s5] sm:$0x3]
    %vm57 = vcmask 15360
    %v59 = vsel %vm57, %v54, 0
    %v62 = vsel %vm57, %v55, 0
    %vm64 = vcmask 1041408
    %v66 = vsel %vm64, %v56, 0
    %68 = vmatprep.subr.mxu0 0.0
    %69 = vmatpush1.msra.mxu0 %v66
    %70 = vmatprep.subr.mxu0 0.0
    %71 = vmatpush1.msra.mxu0 0.0
    %72 = vmatprep.subr.mxu0 0.0
    %73 = vmatpush1.msra.mxu0 0.0
    %74 = vmatprep.subr.mxu0 0.0
    %75 = vmatpush1.msra.mxu0 0.0
    %76 = vmatprep.subr.mxu0 0.0
    %77 = vmatpush1.msra.mxu0 0.0
    %78 = vmatprep.subr.mxu0 0.0
    %79 = vmatpush1.msra.mxu0 0.0
    %80 = vmatprep.subr.mxu0 0.0
    %81 = vmatpush1.msra.mxu0 0.0
    %82 = vmatprep.subr.mxu0 0.0
    %83 = vmatpush1.msra.mxu0 0.0
    %84 = vmatprep.subr.mxu0 0.0
    %85 = vmatpush1.msra.mxu0 0.0
    %86 = vmatprep.subr.mxu0 0.0
    %87 = vmatpush1.msra.mxu0 0.0
    %88 = vmatprep.subr.mxu0 0.0
    %89 = vmatpush1.msra.mxu0 0.0
    %90 = vmatprep.subr.mxu0 0.0
    %91 = vmatpush1.msra.mxu0 0.0
    %92 = vmatprep.subr.mxu0 0.0
    %93 = vmatpush1.msra.mxu0 0.0
    %94 = vmatprep.subr.mxu0 0.0
    %95 = vmatpush1.msra.mxu0 0.0
    %96 = vmatprep.subr.mxu0 0.0
    %97 = vmatpush1.msra.mxu0 0.0
    %98 = vmatprep.subr.mxu0 0.0
    %99 = vmatpush1.msra.mxu0 0.0
    %100 = vmatprep.subr.mxu0 0.0
    %101 = vmatpush1.msra.mxu0 0.0
    %102 = vmatprep.subr.mxu0 0.0
    %103 = vmatpush1.msra.mxu0 0.0
    %104 = vmatprep.subr.mxu0 0.0
    %105 = vmatpush1.msra.mxu0 0.0
    %106 = vmatprep.subr.mxu0 0.0
    %107 = vmatpush1.msra.mxu0 0.0
    %108 = vmatprep.subr.mxu0 0.0
    %109 = vmatpush1.msra.mxu0 0.0
    %110 = vmatprep.subr.mxu0 0.0
    %111 = vmatpush1.msra.mxu0 0.0
    %112 = vmatprep.subr.mxu0 0.0
    %113 = vmatpush1.msra.mxu0 0.0
    %114 = vmatprep.subr.mxu0 0.0
    %115 = vmatpush1.msra.mxu0 0.0
    %116 = vmatprep.subr.mxu0 0.0
    %117 = vmatpush1.msra.mxu0 0.0
    %118 = vmatprep.subr.mxu0 0.0
    %119 = vmatpush1.msra.mxu0 0.0
    %120 = vmatprep.subr.mxu0 0.0
    %121 = vmatpush1.msra.mxu0 0.0
    %122 = vmatprep.subr.mxu0 0.0
    %123 = vmatpush1.msra.mxu0 0.0
    %124 = vmatprep.subr.mxu0 0.0
    %125 = vmatpush1.msra.mxu0 0.0
    %126 = vmatprep.subr.mxu0 0.0
    %127 = vmatpush1.msra.mxu0 0.0
    %128 = vmatprep.subr.mxu0 0.0
    %129 = vmatpush1.msra.mxu0 0.0
    %130 = vmatprep.subr.mxu0 0.0
    %131 = vmatpush1.msra.mxu0 0.0
    %132 = vmatprep.mubr.f32.mxu0 0.0
    %133 = vmatmul.mubr.f32.gmra.mrb[0].mxu0 %v59
    %v134 = vpop.f32.mrb[0].mxu0
    %v135 = vadd.f32 0.0, %v134
    %v136 = vpop.f32.mrb[0].mxu0
    %137 = vmatprep.mubr.f32.mxu0 0.0
    %138 = vmatmul.mubr.f32.gmra.mrb[0].mxu0 %v62
    %v139 = vpop.f32.mrb[0].mxu0
    %v140 = vadd.f32 0.0, %v139
    %v141 = vpop.f32.mrb[0].mxu0
    %142 = vdwg.mxu0
    %vm143 = vcmask 48128
    %v145 = vsel %vm143, %v51, 0
    %v148 = vsel %vm143, %v52, 0
    %vm150 = vcmask 1045504
    %v152 = vsel %vm150, %v53, 0
    %154 = vmatprep.subr.mxu0 0.0
    %155 = vmatpush1.msra.mxu0 %v152
    %156 = vmatprep.subr.mxu0 0.0
    %157 = vmatpush1.msra.mxu0 0.0
    %158 = vmatprep.subr.mxu0 0.0
    %159 = vmatpush1.msra.mxu0 0.0
    %160 = vmatprep.subr.mxu0 0.0
    %161 = vmatpush1.msra.mxu0 0.0
    %162 = vmatprep.subr.mxu0 0.0
    %163 = vmatpush1.msra.mxu0 0.0
    %164 = vmatprep.subr.mxu0 0.0
    %165 = vmatpush1.msra.mxu0 0.0
    %166 = vmatprep.subr.mxu0 0.0
    %167 = vmatpush1.msra.mxu0 0.0
    %168 = vmatprep.subr.mxu0 0.0
    %169 = vmatpush1.msra.mxu0 0.0
    %170 = vmatprep.subr.mxu0 0.0
    %171 = vmatpush1.msra.mxu0 0.0
    %172 = vmatprep.subr.mxu0 0.0
    %173 = vmatpush1.msra.mxu0 0.0
    %174 = vmatprep.subr.mxu0 0.0
    %175 = vmatpush1.msra.mxu0 0.0
    %176 = vmatprep.subr.mxu0 0.0
    %177 = vmatpush1.msra.mxu0 0.0
    %178 = vmatprep.subr.mxu0 0.0
    %179 = vmatpush1.msra.mxu0 0.0
    %180 = vmatprep.subr.mxu0 0.0
    %181 = vmatpush1.msra.mxu0 0.0
    %182 = vmatprep.subr.mxu0 0.0
    %183 = vmatpush1.msra.mxu0 0.0
    %184 = vmatprep.subr.mxu0 0.0
    %185 = vmatpush1.msra.mxu0 0.0
    %186 = vmatprep.subr.mxu0 0.0
    %187 = vmatpush1.msra.mxu0 0.0
    %188 = vmatprep.subr.mxu0 0.0
    %189 = vmatpush1.msra.mxu0 0.0
    %190 = vmatprep.subr.mxu0 0.0
    %191 = vmatpush1.msra.mxu0 0.0
    %192 = vmatprep.subr.mxu0 0.0
    %193 = vmatpush1.msra.mxu0 0.0
    %194 = vmatprep.subr.mxu0 0.0
    %195 = vmatpush1.msra.mxu0 0.0
    %196 = vmatprep.subr.mxu0 0.0
    %197 = vmatpush1.msra.mxu0 0.0
    %198 = vmatprep.subr.mxu0 0.0
    %199 = vmatpush1.msra.mxu0 0.0
    %200 = vmatprep.subr.mxu0 0.0
    %201 = vmatpush1.msra.mxu0 0.0
    %202 = vmatprep.subr.mxu0 0.0
    %203 = vmatpush1.msra.mxu0 0.0
    %204 = vmatprep.subr.mxu0 0.0
    %205 = vmatpush1.msra.mxu0 0.0
    %206 = vmatprep.subr.mxu0 0.0
    %207 = vmatpush1.msra.mxu0 0.0
    %208 = vmatprep.subr.mxu0 0.0
    %209 = vmatpush1.msra.mxu0 0.0
    %210 = vmatprep.subr.mxu0 0.0
    %211 = vmatpush1.msra.mxu0 0.0
    %212 = vmatprep.subr.mxu0 0.0
    %213 = vmatpush1.msra.mxu0 0.0
    %214 = vmatprep.subr.mxu0 0.0
    %215 = vmatpush1.msra.mxu0 0.0
    %216 = vmatprep.subr.mxu0 0.0
    %217 = vmatpush1.msra.mxu0 0.0
    %218 = vmatprep.mubr.f32.mxu0 0.0
    %219 = vmatmul.mubr.f32.gmra.mrb[0].mxu0 %v145
    %v220 = vpop.f32.mrb[0].mxu0
    %v221 = vadd.f32 %v135, %v220
    %v222 = vpop.f32.mrb[0].mxu0
    %223 = vmatprep.mubr.f32.mxu0 0.0
    %224 = vmatmul.mubr.f32.gmra.mrb[0].mxu0 %v148
    %v225 = vpop.f32.mrb[0].mxu0
    %v226 = vadd.f32 %v140, %v225
    %v227 = vpop.f32.mrb[0].mxu0
    %228 = vdwg.mxu0
    %v229 = vld [vmem:[%s8] sm:$0x1]
    %v230 = vlaneseq
    %v231 = vshrl.u32 %v230, 7
    %v232 = vsub.s32 0, %v231
    %v233 = vrot.slane %v229, %v232
    %v234 = vadd.f32 %v221, %v233
    %v235 = vadd.f32 %v226, %v233
    %v236 = vmax.f32 %v234, 0.0
    %v237 = vmax.f32 %v235, 0.0
    %v238 = vld [vmem:[#allocation2] sm:$0xff]
    %v239 = vld [vmem:[#allocation2 + $0x8] sm:$0xff]
    %v240 = vld [vmem:[#allocation2 + $0x10] sm:$0xff]
    %v241 = vld [vmem:[#allocation2 + $0x18] sm:$0xff]
    %v242 = vld [vmem:[#allocation2 + $0x20] sm:$0xff]
    %v243 = vld [vmem:[#allocation2 + $0x28] sm:$0xff]
    %v244 = vld [vmem:[#allocation2 + $0x30] sm:$0xff]
    %v245 = vld [vmem:[#allocation2 + $0x38] sm:$0xff]
    %v246 = vld [vmem:[#allocation2 + $0x40] sm:$0xff]
    %v247 = vld [vmem:[#allocation2 + $0x48] sm:$0xff]
    %v248 = vld [vmem:[#allocation2 + $0x50] sm:$0xff]
    %v249 = vld [vmem:[#allocation2 + $0x58] sm:$0xff]
    %v250 = vld [vmem:[#allocation2 + $0x60] sm:$0xff]
    %v251 = vld [vmem:[#allocation2 + $0x68] sm:$0xff]
    %v252 = vld [vmem:[#allocation2 + $0x70] sm:$0xff]
    %v253 = vld [vmem:[#allocation2 + $0x78] sm:$0xff]
    %v254 = vld [vmem:[%s7] sm:$0x3]
    %v256 = vlaneseq
    %v257 = vshrl.u32 %v256, 7
    %v258 = vsub.s32 0, %v257
    %v259 = vrot.slane %v254, %v258
    %v260 = vlaneseq
    %v261 = vshrl.u32 %v260, 7
    %v262 = vsub.s32 1, %v261
    %v263 = vrot.slane %v254, %v262
    %vm266 = vcmask 523264
    %v268 = vsel %vm266, %v236, 0
    %v271 = vsel %vm266, %v237, 0
    %273 = vmatprep.subr.mxu0 %v239
    %274 = vmatpush1.msra.mxu0 %v238
    %275 = vmatprep.subr.mxu0 %v241
    %276 = vmatpush1.msra.mxu0 %v240
    %277 = vmatprep.subr.mxu0 %v243
    %278 = vmatpush1.msra.mxu0 %v242
    %279 = vmatprep.subr.mxu0 %v245
    %280 = vmatpush1.msra.mxu0 %v244
    %281 = vmatprep.subr.mxu0 %v247
    %282 = vmatpush1.msra.mxu0 %v246
    %283 = vmatprep.subr.mxu0 %v249
    %284 = vmatpush1.msra.mxu0 %v248
    %285 = vmatprep.subr.mxu0 %v251
    %286 = vmatpush1.msra.mxu0 %v250
    %287 = vmatprep.subr.mxu0 %v253
    %288 = vmatpush1.msra.mxu0 %v252
    %289 = vmatprep.subr.mxu0 0.0
    %290 = vmatpush1.msra.mxu0 0.0
    %291 = vmatprep.subr.mxu0 0.0
    %292 = vmatpush1.msra.mxu0 0.0
    %293 = vmatprep.subr.mxu0 0.0
    %294 = vmatpush1.msra.mxu0 0.0
    %295 = vmatprep.subr.mxu0 0.0
    %296 = vmatpush1.msra.mxu0 0.0
    %297 = vmatprep.subr.mxu0 0.0
    %298 = vmatpush1.msra.mxu0 0.0
    %299 = vmatprep.subr.mxu0 0.0
    %300 = vmatpush1.msra.mxu0 0.0
    %301 = vmatprep.subr.mxu0 0.0
    %302 = vmatpush1.msra.mxu0 0.0
    %303 = vmatprep.subr.mxu0 0.0
    %304 = vmatpush1.msra.mxu0 0.0
    %305 = vmatprep.subr.mxu0 0.0
    %306 = vmatpush1.msra.mxu0 0.0
    %307 = vmatprep.subr.mxu0 0.0
    %308 = vmatpush1.msra.mxu0 0.0
    %309 = vmatprep.subr.mxu0 0.0
    %310 = vmatpush1.msra.mxu0 0.0
    %311 = vmatprep.subr.mxu0 0.0
    %312 = vmatpush1.msra.mxu0 0.0
    %313 = vmatprep.subr.mxu0 0.0
    %314 = vmatpush1.msra.mxu0 0.0
    %315 = vmatprep.subr.mxu0 0.0
    %316 = vmatpush1.msra.mxu0 0.0
    %317 = vmatprep.subr.mxu0 0.0
    %318 = vmatpush1.msra.mxu0 0.0
    %319 = vmatprep.subr.mxu0 0.0
    %320 = vmatpush1.msra.mxu0 0.0
    %321 = vmatprep.subr.mxu0 0.0
    %322 = vmatpush1.msra.mxu0 0.0
    %323 = vmatprep.subr.mxu0 0.0
    %324 = vmatpush1.msra.mxu0 0.0
    %325 = vmatprep.subr.mxu0 0.0
    %326 = vmatpush1.msra.mxu0 0.0
    %327 = vmatprep.subr.mxu0 0.0
    %328 = vmatpush1.msra.mxu0 0.0
    %329 = vmatprep.subr.mxu0 0.0
    %330 = vmatpush1.msra.mxu0 0.0
    %331 = vmatprep.subr.mxu0 0.0
    %332 = vmatpush1.msra.mxu0 0.0
    %333 = vmatprep.subr.mxu0 0.0
    %334 = vmatpush1.msra.mxu0 0.0
    %335 = vmatprep.subr.mxu0 0.0
    %336 = vmatpush1.msra.mxu0 0.0
    %337 = vmatprep.mubr.f32.mxu0 0.0
    %338 = vmatmul.mubr.f32.gmra.mrb[0].mxu0 %v268
    %v339 = vpop.f32.mrb[0].mxu0
    %v340 = vadd.f32 %v259, %v339
    %v341 = vpop.f32.mrb[0].mxu0
    %v342 = vadd.f32 %v263, %v341
    %343 = vmatprep.mubr.f32.mxu0 0.0
    %344 = vmatmul.mubr.f32.gmra.mrb[0].mxu0 %v271
    %v345 = vpop.f32.mrb[0].mxu0
    %v346 = vadd.f32 %v259, %v345
    %v347 = vpop.f32.mrb[0].mxu0
    %v348 = vadd.f32 %v263, %v347
    %349 = vdwg.mxu0
    %v350 = vld [vmem:[#allocation2 + $0x80] sm:$0xff]
    %v351 = vld [vmem:[#allocation2 + $0x88] sm:$0xff]
    %v352 = vld [vmem:[#allocation2 + $0x90] sm:$0xff]
    %v353 = vld [vmem:[#allocation2 + $0x98] sm:$0xff]
    %v354 = vld [vmem:[#allocation2 + $0xa0] sm:$0xff]
    %v355 = vld [vmem:[#allocation2 + $0xa8] sm:$0xff]
    %v356 = vld [vmem:[#allocation2 + $0xb0] sm:$0xff]
    %v357 = vld [vmem:[#allocation2 + $0xb8] sm:$0xff]
    %v358 = vld [vmem:[#allocation2 + $0xc0] sm:$0xff]
    %v359 = vld [vmem:[#allocation2 + $0xc8] sm:$0xff]
    %v360 = vld [vmem:[#allocation2 + $0xd0] sm:$0xff]
    %v361 = vld [vmem:[#allocation2 + $0xd8] sm:$0xff]
    %v362 = vld [vmem:[#allocation2 + $0xe0] sm:$0xff]
    %v363 = vld [vmem:[#allocation2 + $0xe8] sm:$0xff]
    %v364 = vld [vmem:[#allocation2 + $0xf0] sm:$0xff]
    %v365 = vld [vmem:[#allocation2 + $0xf8] sm:$0xff]
    %v366 = vld [vmem:[%s2] sm:$0x3]
    %v367 = vld [vmem:[%s3] sm:$0x3]
    %v369 = vsel %vm266, %v366, 0
    %371 = vmatprep.subr.mxu0 %v351
    %372 = vmatpush1.msra.mxu0 %v350
    %373 = vmatprep.subr.mxu0 %v353
    %374 = vmatpush1.msra.mxu0 %v352
    %375 = vmatprep.subr.mxu0 %v355
    %376 = vmatpush1.msra.mxu0 %v354
    %377 = vmatprep.subr.mxu0 %v357
    %378 = vmatpush1.msra.mxu0 %v356
    %379 = vmatprep.subr.mxu0 %v359
    %380 = vmatpush1.msra.mxu0 %v358
    %381 = vmatprep.subr.mxu0 %v361
    %382 = vmatpush1.msra.mxu0 %v360
    %383 = vmatprep.subr.mxu0 %v363
    %384 = vmatpush1.msra.mxu0 %v362
    %385 = vmatprep.subr.mxu0 %v365
    %386 = vmatpush1.msra.mxu0 %v364
    %387 = vmatprep.subr.mxu0 0.0
    %388 = vmatpush1.msra.mxu0 0.0
    %389 = vmatprep.subr.mxu0 0.0
    %390 = vmatpush1.msra.mxu0 0.0
    %391 = vmatprep.subr.mxu0 0.0
    %392 = vmatpush1.msra.mxu0 0.0
    %393 = vmatprep.subr.mxu0 0.0
    %394 = vmatpush1.msra.mxu0 0.0
    %395 = vmatprep.subr.mxu0 0.0
    %396 = vmatpush1.msra.mxu0 0.0
    %397 = vmatprep.subr.mxu0 0.0
    %398 = vmatpush1.msra.mxu0 0.0
    %399 = vmatprep.subr.mxu0 0.0
    %400 = vmatpush1.msra.mxu0 0.0
    %401 = vmatprep.subr.mxu0 0.0
    %402 = vmatpush1.msra.mxu0 0.0
    %403 = vmatprep.subr.mxu0 0.0
    %404 = vmatpush1.msra.mxu0 0.0
    %405 = vmatprep.subr.mxu0 0.0
    %406 = vmatpush1.msra.mxu0 0.0
    %407 = vmatprep.subr.mxu0 0.0
    %408 = vmatpush1.msra.mxu0 0.0
    %409 = vmatprep.subr.mxu0 0.0
    %410 = vmatpush1.msra.mxu0 0.0
    %411 = vmatprep.subr.mxu0 0.0
    %412 = vmatpush1.msra.mxu0 0.0
    %413 = vmatprep.subr.mxu0 0.0
    %414 = vmatpush1.msra.mxu0 0.0
    %415 = vmatprep.subr.mxu0 0.0
    %416 = vmatpush1.msra.mxu0 0.0
    %417 = vmatprep.subr.mxu0 0.0
    %418 = vmatpush1.msra.mxu0 0.0
    %419 = vmatprep.subr.mxu0 0.0
    %420 = vmatpush1.msra.mxu0 0.0
    %421 = vmatprep.subr.mxu0 0.0
    %422 = vmatpush1.msra.mxu0 0.0
    %423 = vmatprep.subr.mxu0 0.0
    %424 = vmatpush1.msra.mxu0 0.0
    %425 = vmatprep.subr.mxu0 0.0
    %426 = vmatpush1.msra.mxu0 0.0
    %427 = vmatprep.subr.mxu0 0.0
    %428 = vmatpush1.msra.mxu0 0.0
    %429 = vmatprep.subr.mxu0 0.0
    %430 = vmatpush1.msra.mxu0 0.0
    %431 = vmatprep.subr.mxu0 0.0
    %432 = vmatpush1.msra.mxu0 0.0
    %433 = vmatprep.subr.mxu0 0.0
    %434 = vmatpush1.msra.mxu0 0.0
    %435 = vmatprep.mubr.f32.mxu0 0.0
    %436 = vmatmul.mubr.f32.gmra.mrb[0].mxu0 %v369
    %v437 = vpop.f32.mrb[0].mxu0
    %v438 = vadd.f32 0.0, %v437
    %v439 = vpop.f32.mrb[0].mxu0
    %v440 = vadd.f32 0.0, %v439
    %441 = vdwg.mxu0
    %v444 = vrot.slane %v438, 1
    %v445 = vrot.slane %v440, 1
    %v450 = vadd.f32 %v340, %v438
    %v451 = vadd.f32 %v342, %v440
    %v452 = vadd.f32 %v346, %v444
    %v453 = vadd.f32 %v348, %v445
    %v454 = vmul.f32 %v450, 0.5
    %v455 = vmul.f32 %v451, 0.5
    %v456 = vmul.f32 %v452, 0.5
    %v457 = vmul.f32 %v453, 0.5
    %v458 = vtanh.pop %v454
    %v459 = vtanh.pop %v455
    %v460 = vtanh.pop %v456
    %v461 = vtanh.pop %v457
    %v462 = vmul.f32 %v458, 0.5
    %v463 = vmul.f32 %v459, 0.5
    %v464 = vmul.f32 %v460, 0.5
    %v465 = vmul.f32 %v461, 0.5
    %v466 = vadd.f32 %v462, 0.5
    %v467 = vadd.f32 %v463, 0.5
    %v468 = vadd.f32 %v464, 0.5
    %v469 = vadd.f32 %v465, 0.5
    %v470 = vtanh.pop %v451
    %v471 = vtanh.pop %v453
    %v473 = vrot.slane %v367, 1
    %474 = vrot.lane.b32.xlu0 %v367, 64
    %v475 = vpop.permute.xlu0 %474
    %476 = vrot.lane.b32.xlu0 %v473, 64
    %v477 = vpop.permute.xlu0 %476
    %v480 = vmul.f32 %v466, %v475
    %v481 = vmul.f32 %v468, %v477
    %484 = vrot.lane.b32.xlu0 %v470, 64
    %v485 = vpop.permute.xlu0 %484
    %486 = vrot.lane.b32.xlu0 %v471, 64
    %v487 = vpop.permute.xlu0 %486
    %v490 = vmul.f32 %v466, %v485
    %v491 = vmul.f32 %v468, %v487
    %494 = vrot.lane.b32.xlu0 %v490, 64
    %v495 = vpop.permute.xlu0 %494
    %496 = vrot.lane.b32.xlu0 %v491, 64
    %v497 = vpop.permute.xlu0 %496
    %v500 = vadd.f32 %v480, %v495
    %v501 = vadd.f32 %v481, %v497
    %v502 = vtanh.pop %v500
    %v503 = vtanh.pop %v501
    %506 = vrot.lane.b32.xlu0 %v502, 64
    %v507 = vpop.permute.xlu0 %506
    %508 = vrot.lane.b32.xlu0 %v503, 64
    %v509 = vpop.permute.xlu0 %508
    %v512 = vmul.f32 %v467, %v507
    %v513 = vmul.f32 %v469, %v509
    %v516 = vrot.slane %v513, 7
    %vm517 = vcmask 1041409
    %v518 = vsel %vm517, %v516, %v512
    %v519 = vsel %vm266, %v518, 0
    %521 = vmatprep.subr.mxu0 %v351
    %522 = vmatpush1.msra.mxu0 %v350
    %523 = vmatprep.subr.mxu0 %v353
    %524 = vmatpush1.msra.mxu0 %v352
    %525 = vmatprep.subr.mxu0 %v355
    %526 = vmatpush1.msra.mxu0 %v354
    %527 = vmatprep.subr.mxu0 %v357
    %528 = vmatpush1.msra.mxu0 %v356
    %529 = vmatprep.subr.mxu0 %v359
    %530 = vmatpush1.msra.mxu0 %v358
    %531 = vmatprep.subr.mxu0 %v361
    %532 = vmatpush1.msra.mxu0 %v360
    %533 = vmatprep.subr.mxu0 %v363
    %534 = vmatpush1.msra.mxu0 %v362
    %535 = vmatprep.subr.mxu0 %v365
    %536 = vmatpush1.msra.mxu0 %v364
    %537 = vmatprep.subr.mxu0 0.0
    %538 = vmatpush1.msra.mxu0 0.0
    %539 = vmatprep.subr.mxu0 0.0
    %540 = vmatpush1.msra.mxu0 0.0
    %541 = vmatprep.subr.mxu0 0.0
    %542 = vmatpush1.msra.mxu0 0.0
    %543 = vmatprep.subr.mxu0 0.0
    %544 = vmatpush1.msra.mxu0 0.0
    %545 = vmatprep.subr.mxu0 0.0
    %546 = vmatpush1.msra.mxu0 0.0
    %547 = vmatprep.subr.mxu0 0.0
    %548 = vmatpush1.msra.mxu0 0.0
    %549 = vmatprep.subr.mxu0 0.0
    %550 = vmatpush1.msra.mxu0 0.0
    %551 = vmatprep.subr.mxu0 0.0
    %552 = vmatpush1.msra.mxu0 0.0
    %553 = vmatprep.subr.mxu0 0.0
    %554 = vmatpush1.msra.mxu0 0.0
    %555 = vmatprep.subr.mxu0 0.0
    %556 = vmatpush1.msra.mxu0 0.0
    %557 = vmatprep.subr.mxu0 0.0
    %558 = vmatpush1.msra.mxu0 0.0
    %559 = vmatprep.subr.mxu0 0.0
    %560 = vmatpush1.msra.mxu0 0.0
    %561 = vmatprep.subr.mxu0 0.0
    %562 = vmatpush1.msra.mxu0 0.0
    %563 = vmatprep.subr.mxu0 0.0
    %564 = vmatpush1.msra.mxu0 0.0
    %565 = vmatprep.subr.mxu0 0.0
    %566 = vmatpush1.msra.mxu0 0.0
    %567 = vmatprep.subr.mxu0 0.0
    %568 = vmatpush1.msra.mxu0 0.0
    %569 = vmatprep.subr.mxu0 0.0
    %570 = vmatpush1.msra.mxu0 0.0
    %571 = vmatprep.subr.mxu0 0.0
    %572 = vmatpush1.msra.mxu0 0.0
    %573 = vmatprep.subr.mxu0 0.0
    %574 = vmatpush1.msra.mxu0 0.0
    %575 = vmatprep.subr.mxu0 0.0
    %576 = vmatpush1.msra.mxu0 0.0
    %577 = vmatprep.subr.mxu0 0.0
    %578 = vmatpush1.msra.mxu0 0.0
    %579 = vmatprep.subr.mxu0 0.0
    %580 = vmatpush1.msra.mxu0 0.0
    %581 = vmatprep.subr.mxu0 0.0
    %582 = vmatpush1.msra.mxu0 0.0
    %583 = vmatprep.subr.mxu0 0.0
    %584 = vmatpush1.msra.mxu0 0.0
    %585 = vmatprep.mubr.f32.mxu0 0.0
    %586 = vmatmul.mubr.f32.gmra.mrb[0].mxu0 %v519
    %v587 = vpop.f32.mrb[0].mxu0
    %v588 = vadd.f32 0.0, %v587
    %v589 = vpop.f32.mrb[0].mxu0
    %v590 = vadd.f32 0.0, %v589
    %591 = vdwg.mxu0
    %v594 = vrot.slane %v588, 7
    %v595 = vrot.slane %v590, 7
    %v600 = vadd.f32 %v340, %v594
    %v601 = vadd.f32 %v342, %v595
    %v602 = vadd.f32 %v346, %v588
    %v603 = vadd.f32 %v348, %v590
    %v604 = vmul.f32 %v600, 0.5
    %v605 = vmul.f32 %v601, 0.5
    %v606 = vmul.f32 %v602, 0.5
    %v607 = vmul.f32 %v603, 0.5
    %v608 = vtanh.pop %v604
    %v609 = vtanh.pop %v605
    %v610 = vtanh.pop %v606
    %v611 = vtanh.pop %v607
    %v612 = vmul.f32 %v608, 0.5
    %v613 = vmul.f32 %v609, 0.5
    %v614 = vmul.f32 %v610, 0.5
    %v615 = vmul.f32 %v611, 0.5
    %v616 = vadd.f32 %v612, 0.5
    %v617 = vadd.f32 %v613, 0.5
    %v618 = vadd.f32 %v614, 0.5
    %v619 = vadd.f32 %v615, 0.5
    %v620 = vtanh.pop %v601
    %v621 = vtanh.pop %v603
    %v624 = vrot.slane %v500, 7
    %v625 = vrot.slane %v501, 7
    %v628 = vmul.f32 %v616, %v624
    %v629 = vmul.f32 %v618, %v625
    %632 = vrot.lane.b32.xlu0 %v620, 64
    %v633 = vpop.permute.xlu0 %632
    %634 = vrot.lane.b32.xlu0 %v621, 64
    %v635 = vpop.permute.xlu0 %634
    %v638 = vmul.f32 %v616, %v633
    %v639 = vmul.f32 %v618, %v635
    %642 = vrot.lane.b32.xlu0 %v638, 64
    %v643 = vpop.permute.xlu0 %642
    %644 = vrot.lane.b32.xlu0 %v639, 64
    %v645 = vpop.permute.xlu0 %644
    %v648 = vadd.f32 %v628, %v643
    %v649 = vadd.f32 %v629, %v645
    %v650 = vtanh.pop %v648
    %v651 = vtanh.pop %v649
    %654 = vrot.lane.b32.xlu0 %v650, 64
    %v655 = vpop.permute.xlu0 %654
    %656 = vrot.lane.b32.xlu0 %v651, 64
    %v657 = vpop.permute.xlu0 %656
    %v660 = vmul.f32 %v617, %v655
    %v661 = vmul.f32 %v619, %v657
    %v664 = vrot.slane %v660, 1
    %v665 = vsel %vm517, %v661, %v664
    %v666 = vsel %vm266, %v665, 0
    %668 = vmatprep.subr.mxu0 %v351
    %669 = vmatpush1.msra.mxu0 %v350
    %670 = vmatprep.subr.mxu0 %v353
    %671 = vmatpush1.msra.mxu0 %v352
    %672 = vmatprep.subr.mxu0 %v355
    %673 = vmatpush1.msra.mxu0 %v354
    %674 = vmatprep.subr.mxu0 %v357
    %675 = vmatpush1.msra.mxu0 %v356
    %676 = vmatprep.subr.mxu0 %v359
    %677 = vmatpush1.msra.mxu0 %v358
    %678 = vmatprep.subr.mxu0 %v361
    %679 = vmatpush1.msra.mxu0 %v360
    %680 = vmatprep.subr.mxu0 %v363
    %681 = vmatpush1.msra.mxu0 %v362
    %682 = vmatprep.subr.mxu0 %v365
    %683 = vmatpush1.msra.mxu0 %v364
    %684 = vmatprep.subr.mxu0 0.0
    %685 = vmatpush1.msra.mxu0 0.0
    %686 = vmatprep.subr.mxu0 0.0
    %687 = vmatpush1.msra.mxu0 0.0
    %688 = vmatprep.subr.mxu0 0.0
    %689 = vmatpush1.msra.mxu0 0.0
    %690 = vmatprep.subr.mxu0 0.0
    %691 = vmatpush1.msra.mxu0 0.0
    %692 = vmatprep.subr.mxu0 0.0
    %693 = vmatpush1.msra.mxu0 0.0
    %694 = vmatprep.subr.mxu0 0.0
    %695 = vmatpush1.msra.mxu0 0.0
    %696 = vmatprep.subr.mxu0 0.0
    %697 = vmatpush1.msra.mxu0 0.0
    %698 = vmatprep.subr.mxu0 0.0
    %699 = vmatpush1.msra.mxu0 0.0
    %700 = vmatprep.subr.mxu0 0.0
    %701 = vmatpush1.msra.mxu0 0.0
    %702 = vmatprep.subr.mxu0 0.0
    %703 = vmatpush1.msra.mxu0 0.0
    %704 = vmatprep.subr.mxu0 0.0
    %705 = vmatpush1.msra.mxu0 0.0
    %706 = vmatprep.subr.mxu0 0.0
    %707 = vmatpush1.msra.mxu0 0.0
    %708 = vmatprep.subr.mxu0 0.0
    %709 = vmatpush1.msra.mxu0 0.0
    %710 = vmatprep.subr.mxu0 0.0
    %711 = vmatpush1.msra.mxu0 0.0
    %712 = vmatprep.subr.mxu0 0.0
    %713 = vmatpush1.msra.mxu0 0.0
    %714 = vmatprep.subr.mxu0 0.0
    %715 = vmatpush1.msra.mxu0 0.0
    %716 = vmatprep.subr.mxu0 0.0
    %717 = vmatpush1.msra.mxu0 0.0
    %718 = vmatprep.subr.mxu0 0.0
    %719 = vmatpush1.msra.mxu0 0.0
    %720 = vmatprep.subr.mxu0 0.0
    %721 = vmatpush1.msra.mxu0 0.0
    %722 = vmatprep.subr.mxu0 0.0
    %723 = vmatpush1.msra.mxu0 0.0
    %724 = vmatprep.subr.mxu0 0.0
    %725 = vmatpush1.msra.mxu0 0.0
    %726 = vmatprep.subr.mxu0 0.0
    %727 = vmatpush1.msra.mxu0 0.0
    %728 = vmatprep.subr.mxu0 0.0
    %729 = vmatpush1.msra.mxu0 0.0
    %730 = vmatprep.subr.mxu0 0.0
    %731 = vmatpush1.msra.mxu0 0.0
    %732 = vmatprep.mubr.f32.mxu0 0.0
    %733 = vmatmul.mubr.f32.gmra.mrb[0].mxu0 %v666
    %v734 = vpop.f32.mrb[0].mxu0
    %v735 = vadd.f32 0.0, %v734
    %v736 = vpop.f32.mrb[0].mxu0
    %v737 = vadd.f32 0.0, %v736
    %738 = vdwg.mxu0
    %v741 = vrot.slane %v735, 6
    %v742 = vrot.slane %v737, 6
    %v743 = vrot.slane %v735, 7
    %v744 = vrot.slane %v737, 7
    %v749 = vadd.f32 %v340, %v741
    %v750 = vadd.f32 %v342, %v742
    %v751 = vadd.f32 %v346, %v743
    %v752 = vadd.f32 %v348, %v744
    %v753 = vmul.f32 %v749, 0.5
    %v754 = vmul.f32 %v750, 0.5
    %v755 = vmul.f32 %v751, 0.5
    %v756 = vmul.f32 %v752, 0.5
    %v757 = vtanh.pop %v753
    %v758 = vtanh.pop %v754
    %v759 = vtanh.pop %v755
    %v760 = vtanh.pop %v756
    %v761 = vmul.f32 %v757, 0.5
    %v762 = vmul.f32 %v758, 0.5
    %v763 = vmul.f32 %v759, 0.5
    %v764 = vmul.f32 %v760, 0.5
    %v765 = vadd.f32 %v761, 0.5
    %v766 = vadd.f32 %v762, 0.5
    %v767 = vadd.f32 %v763, 0.5
    %v768 = vadd.f32 %v764, 0.5
    %v769 = vtanh.pop %v750
    %v770 = vtanh.pop %v752
    %v773 = vrot.slane %v648, 7
    %v774 = vrot.slane %v649, 7
    %v777 = vmul.f32 %v765, %v773
    %v778 = vmul.f32 %v767, %v774
    %781 = vrot.lane.b32.xlu0 %v769, 64
    %v782 = vpop.permute.xlu0 %781
    %783 = vrot.lane.b32.xlu0 %v770, 64
    %v784 = vpop.permute.xlu0 %783
    %v787 = vmul.f32 %v765, %v782
    %v788 = vmul.f32 %v767, %v784
    %791 = vrot.lane.b32.xlu0 %v787, 64
    %v792 = vpop.permute.xlu0 %791
    %793 = vrot.lane.b32.xlu0 %v788, 64
    %v794 = vpop.permute.xlu0 %793
    %v797 = vadd.f32 %v777, %v792
    %v798 = vadd.f32 %v778, %v794
    %v799 = vtanh.pop %v797
    %v800 = vtanh.pop %v798
    %803 = vrot.lane.b32.xlu0 %v799, 64
    %v804 = vpop.permute.xlu0 %803
    %805 = vrot.lane.b32.xlu0 %v800, 64
    %v806 = vpop.permute.xlu0 %805
    %v809 = vmul.f32 %v766, %v804
    %v810 = vmul.f32 %v768, %v806
    %v813 = vrot.slane %v809, 2
    %v814 = vrot.slane %v810, 1
    %v815 = vsel %vm517, %v814, %v813
    %v816 = vsel %vm266, %v815, 0
    %818 = vmatprep.subr.mxu0 %v351
    %819 = vmatpush1.msra.mxu0 %v350
    %820 = vmatprep.subr.mxu0 %v353
    %821 = vmatpush1.msra.mxu0 %v352
    %822 = vmatprep.subr.mxu0 %v355
    %823 = vmatpush1.msra.mxu0 %v354
    %824 = vmatprep.subr.mxu0 %v357
    %825 = vmatpush1.msra.mxu0 %v356
    %826 = vmatprep.subr.mxu0 %v359
    %827 = vmatpush1.msra.mxu0 %v358
    %828 = vmatprep.subr.mxu0 %v361
    %829 = vmatpush1.msra.mxu0 %v360
    %830 = vmatprep.subr.mxu0 %v363
    %831 = vmatpush1.msra.mxu0 %v362
    %832 = vmatprep.subr.mxu0 %v365
    %833 = vmatpush1.msra.mxu0 %v364
    %834 = vmatprep.subr.mxu0 0.0
    %835 = vmatpush1.msra.mxu0 0.0
    %836 = vmatprep.subr.mxu0 0.0
    %837 = vmatpush1.msra.mxu0 0.0
    %838 = vmatprep.subr.mxu0 0.0
    %839 = vmatpush1.msra.mxu0 0.0
    %840 = vmatprep.subr.mxu0 0.0
    %841 = vmatpush1.msra.mxu0 0.0
    %842 = vmatprep.subr.mxu0 0.0
    %843 = vmatpush1.msra.mxu0 0.0
    %844 = vmatprep.subr.mxu0 0.0
    %845 = vmatpush1.msra.mxu0 0.0
    %846 = vmatprep.subr.mxu0 0.0
    %847 = vmatpush1.msra.mxu0 0.0
    %848 = vmatprep.subr.mxu0 0.0
    %849 = vmatpush1.msra.mxu0 0.0
    %850 = vmatprep.subr.mxu0 0.0
    %851 = vmatpush1.msra.mxu0 0.0
    %852 = vmatprep.subr.mxu0 0.0
    %853 = vmatpush1.msra.mxu0 0.0
    %854 = vmatprep.subr.mxu0 0.0
    %855 = vmatpush1.msra.mxu0 0.0
    %856 = vmatprep.subr.mxu0 0.0
    %857 = vmatpush1.msra.mxu0 0.0
    %858 = vmatprep.subr.mxu0 0.0
    %859 = vmatpush1.msra.mxu0 0.0
    %860 = vmatprep.subr.mxu0 0.0
    %861 = vmatpush1.msra.mxu0 0.0
    %862 = vmatprep.subr.mxu0 0.0
    %863 = vmatpush1.msra.mxu0 0.0
    %864 = vmatprep.subr.mxu0 0.0
    %865 = vmatpush1.msra.mxu0 0.0
    %866 = vmatprep.subr.mxu0 0.0
    %867 = vmatpush1.msra.mxu0 0.0
    %868 = vmatprep.subr.mxu0 0.0
    %869 = vmatpush1.msra.mxu0 0.0
    %870 = vmatprep.subr.mxu0 0.0
    %871 = vmatpush1.msra.mxu0 0.0
    %872 = vmatprep.subr.mxu0 0.0
    %873 = vmatpush1.msra.mxu0 0.0
    %874 = vmatprep.subr.mxu0 0.0
    %875 = vmatpush1.msra.mxu0 0.0
    %876 = vmatprep.subr.mxu0 0.0
    %877 = vmatpush1.msra.mxu0 0.0
    %878 = vmatprep.subr.mxu0 0.0
    %879 = vmatpush1.msra.mxu0 0.0
    %880 = vmatprep.subr.mxu0 0.0
    %881 = vmatpush1.msra.mxu0 0.0
    %882 = vmatprep.mubr.f32.mxu0 0.0
    %883 = vmatmul.mubr.f32.gmra.mrb[0].mxu0 %v816
    %v884 = vpop.f32.mrb[0].mxu0
    %v885 = vadd.f32 0.0, %v884
    %v886 = vpop.f32.mrb[0].mxu0
    %v887 = vadd.f32 0.0, %v886
    %888 = vdwg.mxu0
    %v891 = vrot.slane %v885, 5
    %v892 = vrot.slane %v887, 5
    %v893 = vrot.slane %v885, 6
    %v894 = vrot.slane %v887, 6
    %v899 = vadd.f32 %v340, %v891
    %v900 = vadd.f32 %v342, %v892
    %v901 = vadd.f32 %v346, %v893
    %v902 = vadd.f32 %v348, %v894
    %v903 = vmul.f32 %v899, 0.5
    %v904 = vmul.f32 %v900, 0.5
    %v905 = vmul.f32 %v901, 0.5
    %v906 = vmul.f32 %v902, 0.5
    %v907 = vtanh.pop %v903
    %v908 = vtanh.pop %v904
    %v909 = vtanh.pop %v905
    %v910 = vtanh.pop %v906
    %v911 = vmul.f32 %v907, 0.5
    %v912 = vmul.f32 %v908, 0.5
    %v913 = vmul.f32 %v909, 0.5
    %v914 = vmul.f32 %v910, 0.5
    %v915 = vadd.f32 %v911, 0.5
    %v916 = vadd.f32 %v912, 0.5
    %v917 = vadd.f32 %v913, 0.5
    %v918 = vadd.f32 %v914, 0.5
    %v919 = vtanh.pop %v900
    %v920 = vtanh.pop %v902
    %v923 = vrot.slane %v797, 7
    %v924 = vrot.slane %v798, 7
    %v927 = vmul.f32 %v915, %v923
    %v928 = vmul.f32 %v917, %v924
    %931 = vrot.lane.b32.xlu0 %v919, 64
    %v932 = vpop.permute.xlu0 %931
    %933 = vrot.lane.b32.xlu0 %v920, 64
    %v934 = vpop.permute.xlu0 %933
    %v937 = vmul.f32 %v915, %v932
    %v938 = vmul.f32 %v917, %v934
    %941 = vrot.lane.b32.xlu0 %v937, 64
    %v942 = vpop.permute.xlu0 %941
    %943 = vrot.lane.b32.xlu0 %v938, 64
    %v944 = vpop.permute.xlu0 %943
    %v947 = vadd.f32 %v927, %v942
    %v948 = vadd.f32 %v928, %v944
    %v949 = vtanh.pop %v947
    %v950 = vtanh.pop %v948
    %953 = vrot.lane.b32.xlu0 %v949, 64
    %v954 = vpop.permute.xlu0 %953
    %955 = vrot.lane.b32.xlu0 %v950, 64
    %v956 = vpop.permute.xlu0 %955
    %v959 = vmul.f32 %v916, %v954
    %v960 = vmul.f32 %v918, %v956
    %v963 = vrot.slane %v959, 3
    %v964 = vrot.slane %v960, 2
    %v965 = vsel %vm517, %v964, %v963
    %v966 = vsel %vm266, %v965, 0
    %968 = vmatprep.subr.mxu0 %v351
    %969 = vmatpush1.msra.mxu0 %v350
    %970 = vmatprep.subr.mxu0 %v353
    %971 = vmatpush1.msra.mxu0 %v352
    %972 = vmatprep.subr.mxu0 %v355
    %973 = vmatpush1.msra.mxu0 %v354
    %974 = vmatprep.subr.mxu0 %v357
    %975 = vmatpush1.msra.mxu0 %v356
    %976 = vmatprep.subr.mxu0 %v359
    %977 = vmatpush1.msra.mxu0 %v358
    %978 = vmatprep.subr.mxu0 %v361
    %979 = vmatpush1.msra.mxu0 %v360
    %980 = vmatprep.subr.mxu0 %v363
    %981 = vmatpush1.msra.mxu0 %v362
    %982 = vmatprep.subr.mxu0 %v365
    %983 = vmatpush1.msra.mxu0 %v364
    %984 = vmatprep.subr.mxu0 0.0
    %985 = vmatpush1.msra.mxu0 0.0
    %986 = vmatprep.subr.mxu0 0.0
    %987 = vmatpush1.msra.mxu0 0.0
    %988 = vmatprep.subr.mxu0 0.0
    %989 = vmatpush1.msra.mxu0 0.0
    %990 = vmatprep.subr.mxu0 0.0
    %991 = vmatpush1.msra.mxu0 0.0
    %992 = vmatprep.subr.mxu0 0.0
    %993 = vmatpush1.msra.mxu0 0.0
    %994 = vmatprep.subr.mxu0 0.0
    %995 = vmatpush1.msra.mxu0 0.0
    %996 = vmatprep.subr.mxu0 0.0
    %997 = vmatpush1.msra.mxu0 0.0
    %998 = vmatprep.subr.mxu0 0.0
    %999 = vmatpush1.msra.mxu0 0.0
    %1000 = vmatprep.subr.mxu0 0.0
    %1001 = vmatpush1.msra.mxu0 0.0
    %1002 = vmatprep.subr.mxu0 0.0
    %1003 = vmatpush1.msra.mxu0 0.0
    %1004 = vmatprep.subr.mxu0 0.0
    %1005 = vmatpush1.msra.mxu0 0.0
    %1006 = vmatprep.subr.mxu0 0.0
    %1007 = vmatpush1.msra.mxu0 0.0
    %1008 = vmatprep.subr.mxu0 0.0
    %1009 = vmatpush1.msra.mxu0 0.0
    %1010 = vmatprep.subr.mxu0 0.0
    %1011 = vmatpush1.msra.mxu0 0.0
    %1012 = vmatprep.subr.mxu0 0.0
    %1013 = vmatpush1.msra.mxu0 0.0
    %1014 = vmatprep.subr.mxu0 0.0
    %1015 = vmatpush1.msra.mxu0 0.0
    %1016 = vmatprep.subr.mxu0 0.0
    %1017 = vmatpush1.msra.mxu0 0.0
    %1018 = vmatprep.subr.mxu0 0.0
    %1019 = vmatpush1.msra.mxu0 0.0
    %1020 = vmatprep.subr.mxu0 0.0
    %1021 = vmatpush1.msra.mxu0 0.0
    %1022 = vmatprep.subr.mxu0 0.0
    %1023 = vmatpush1.msra.mxu0 0.0
    %1024 = vmatprep.subr.mxu0 0.0
    %1025 = vmatpush1.msra.mxu0 0.0
    %1026 = vmatprep.subr.mxu0 0.0
    %1027 = vmatpush1.msra.mxu0 0.0
    %1028 = vmatprep.subr.mxu0 0.0
    %1029 = vmatpush1.msra.mxu0 0.0
    %1030 = vmatprep.subr.mxu0 0.0
    %1031 = vmatpush1.msra.mxu0 0.0
    %1032 = vmatprep.mubr.f32.mxu0 0.0
    %1033 = vmatmul.mubr.f32.gmra.mrb[0].mxu0 %v966
    %v1034 = vpop.f32.mrb[0].mxu0
    %v1035 = vadd.f32 0.0, %v1034
    %v1036 = vpop.f32.mrb[0].mxu0
    %v1037 = vadd.f32 0.0, %v1036
    %1038 = vdwg.mxu0
    %v1041 = vrot.slane %v1035, 4
    %v1042 = vrot.slane %v1037, 4
    %v1043 = vrot.slane %v1035, 5
    %v1044 = vrot.slane %v1037, 5
    %v1049 = vadd.f32 %v340, %v1041
    %v1050 = vadd.f32 %v342, %v1042
    %v1051 = vadd.f32 %v346, %v1043
    %v1052 = vadd.f32 %v348, %v1044
    %v1053 = vmul.f32 %v1049, 0.5
    %v1054 = vmul.f32 %v1050, 0.5
    %v1055 = vmul.f32 %v1051, 0.5
    %v1056 = vmul.f32 %v1052, 0.5
    %v1057 = vtanh.pop %v1053
    %v1058 = vtanh.pop %v1054
    %v1059 = vtanh.pop %v1055
    %v1060 = vtanh.pop %v1056
    %v1061 = vmul.f32 %v1057, 0.5
    %v1062 = vmul.f32 %v1058, 0.5
    %v1063 = vmul.f32 %v1059, 0.5
    %v1064 = vmul.f32 %v1060, 0.5
    %v1065 = vadd.f32 %v1061, 0.5
    %v1066 = vadd.f32 %v1062, 0.5
    %v1067 = vadd.f32 %v1063, 0.5
    %v1068 = vadd.f32 %v1064, 0.5
    %v1069 = vtanh.pop %v1050
    %v1070 = vtanh.pop %v1052
    %v1073 = vrot.slane %v947, 7
    %v1074 = vrot.slane %v948, 7
    %v1077 = vmul.f32 %v1065, %v1073
    %v1078 = vmul.f32 %v1067, %v1074
    %1081 = vrot.lane.b32.xlu0 %v1069, 64
    %v1082 = vpop.permute.xlu0 %1081
    %1083 = vrot.lane.b32.xlu0 %v1070, 64
    %v1084 = vpop.permute.xlu0 %1083
    %v1087 = vmul.f32 %v1065, %v1082
    %v1088 = vmul.f32 %v1067, %v1084
    %1091 = vrot.lane.b32.xlu0 %v1087, 64
    %v1092 = vpop.permute.xlu0 %1091
    %1093 = vrot.lane.b32.xlu0 %v1088, 64
    %v1094 = vpop.permute.xlu0 %1093
    %v1097 = vadd.f32 %v1077, %v1092
    %v1098 = vadd.f32 %v1078, %v1094
    %v1099 = vtanh.pop %v1097
    %v1100 = vtanh.pop %v1098
    %1103 = vrot.lane.b32.xlu0 %v1099, 64
    %v1104 = vpop.permute.xlu0 %1103
    %1105 = vrot.lane.b32.xlu0 %v1100, 64
    %v1106 = vpop.permute.xlu0 %1105
    %v1109 = vmul.f32 %v1066, %v1104
    %v1110 = vmul.f32 %v1068, %v1106
    %v1113 = vrot.slane %v1109, 4
    %v1114 = vrot.slane %v1110, 3
    %v1115 = vsel %vm517, %v1114, %v1113
    %v1116 = vsel %vm266, %v1115, 0
    %1118 = vmatprep.subr.mxu0 %v351
    %1119 = vmatpush1.msra.mxu0 %v350
    %1120 = vmatprep.subr.mxu0 %v353
    %1121 = vmatpush1.msra.mxu0 %v352
    %1122 = vmatprep.subr.mxu0 %v355
    %1123 = vmatpush1.msra.mxu0 %v354
    %1124 = vmatprep.subr.mxu0 %v357
    %1125 = vmatpush1.msra.mxu0 %v356
    %1126 = vmatprep.subr.mxu0 %v359
    %1127 = vmatpush1.msra.mxu0 %v358
    %1128 = vmatprep.subr.mxu0 %v361
    %1129 = vmatpush1.msra.mxu0 %v360
    %1130 = vmatprep.subr.mxu0 %v363
    %1131 = vmatpush1.msra.mxu0 %v362
    %1132 = vmatprep.subr.mxu0 %v365
    %1133 = vmatpush1.msra.mxu0 %v364
    %1134 = vmatprep.subr.mxu0 0.0
    %1135 = vmatpush1.msra.mxu0 0.0
    %1136 = vmatprep.subr.mxu0 0.0
    %1137 = vmatpush1.msra.mxu0 0.0
    %1138 = vmatprep.subr.mxu0 0.0
    %1139 = vmatpush1.msra.mxu0 0.0
    %1140 = vmatprep.subr.mxu0 0.0
    %1141 = vmatpush1.msra.mxu0 0.0
    %1142 = vmatprep.subr.mxu0 0.0
    %1143 = vmatpush1.msra.mxu0 0.0
    %1144 = vmatprep.subr.mxu0 0.0
    %1145 = vmatpush1.msra.mxu0 0.0
    %1146 = vmatprep.subr.mxu0 0.0
    %1147 = vmatpush1.msra.mxu0 0.0
    %1148 = vmatprep.subr.mxu0 0.0
    %1149 = vmatpush1.msra.mxu0 0.0
    %1150 = vmatprep.subr.mxu0 0.0
    %1151 = vmatpush1.msra.mxu0 0.0
    %1152 = vmatprep.subr.mxu0 0.0
    %1153 = vmatpush1.msra.mxu0 0.0
    %1154 = vmatprep.subr.mxu0 0.0
    %1155 = vmatpush1.msra.mxu0 0.0
    %1156 = vmatprep.subr.mxu0 0.0
    %1157 = vmatpush1.msra.mxu0 0.0
    %1158 = vmatprep.subr.mxu0 0.0
    %1159 = vmatpush1.msra.mxu0 0.0
    %1160 = vmatprep.subr.mxu0 0.0
    %1161 = vmatpush1.msra.mxu0 0.0
    %1162 = vmatprep.subr.mxu0 0.0
    %1163 = vmatpush1.msra.mxu0 0.0
    %1164 = vmatprep.subr.mxu0 0.0
    %1165 = vmatpush1.msra.mxu0 0.0
    %1166 = vmatprep.subr.mxu0 0.0
    %1167 = vmatpush1.msra.mxu0 0.0
    %1168 = vmatprep.subr.mxu0 0.0
    %1169 = vmatpush1.msra.mxu0 0.0
    %1170 = vmatprep.subr.mxu0 0.0
    %1171 = vmatpush1.msra.mxu0 0.0
    %1172 = vmatprep.subr.mxu0 0.0
    %1173 = vmatpush1.msra.mxu0 0.0
    %1174 = vmatprep.subr.mxu0 0.0
    %1175 = vmatpush1.msra.mxu0 0.0
    %1176 = vmatprep.subr.mxu0 0.0
    %1177 = vmatpush1.msra.mxu0 0.0
    %1178 = vmatprep.subr.mxu0 0.0
    %1179 = vmatpush1.msra.mxu0 0.0
    %1180 = vmatprep.subr.mxu0 0.0
    %1181 = vmatpush1.msra.mxu0 0.0
    %1182 = vmatprep.mubr.f32.mxu0 0.0
    %1183 = vmatmul.mubr.f32.gmra.mrb[0].mxu0 %v1116
    %v1184 = vpop.f32.mrb[0].mxu0
    %v1185 = vadd.f32 0.0, %v1184
    %v1186 = vpop.f32.mrb[0].mxu0
    %v1187 = vadd.f32 0.0, %v1186
    %1188 = vdwg.mxu0
    %v1191 = vrot.slane %v1185, 3
    %v1192 = vrot.slane %v1187, 3
    %v1193 = vrot.slane %v1185, 4
    %v1194 = vrot.slane %v1187, 4
    %v1199 = vadd.f32 %v340, %v1191
    %v1200 = vadd.f32 %v342, %v1192
    %v1201 = vadd.f32 %v346, %v1193
    %v1202 = vadd.f32 %v348, %v1194
    %v1203 = vmul.f32 %v1199, 0.5
    %v1204 = vmul.f32 %v1200, 0.5
    %v1205 = vmul.f32 %v1201, 0.5
    %v1206 = vmul.f32 %v1202, 0.5
    %v1207 = vtanh.pop %v1203
    %v1208 = vtanh.pop %v1204
    %v1209 = vtanh.pop %v1205
    %v1210 = vtanh.pop %v1206
    %v1211 = vmul.f32 %v1207, 0.5
    %v1212 = vmul.f32 %v1208, 0.5
    %v1213 = vmul.f32 %v1209, 0.5
    %v1214 = vmul.f32 %v1210, 0.5
    %v1215 = vadd.f32 %v1211, 0.5
    %v1216 = vadd.f32 %v1212, 0.5
    %v1217 = vadd.f32 %v1213, 0.5
    %v1218 = vadd.f32 %v1214, 0.5
    %v1219 = vtanh.pop %v1200
    %v1220 = vtanh.pop %v1202
    %v1223 = vrot.slane %v1097, 7
    %v1224 = vrot.slane %v1098, 7
    %v1227 = vmul.f32 %v1215, %v1223
    %v1228 = vmul.f32 %v1217, %v1224
    %1231 = vrot.lane.b32.xlu0 %v1219, 64
    %v1232 = vpop.permute.xlu0 %1231
    %1233 = vrot.lane.b32.xlu0 %v1220, 64
    %v1234 = vpop.permute.xlu0 %1233
    %v1237 = vmul.f32 %v1215, %v1232
    %v1238 = vmul.f32 %v1217, %v1234
    %1241 = vrot.lane.b32.xlu0 %v1237, 64
    %v1242 = vpop.permute.xlu0 %1241
    %1243 = vrot.lane.b32.xlu0 %v1238, 64
    %v1244 = vpop.permute.xlu0 %1243
    %v1247 = vadd.f32 %v1227, %v1242
    %v1248 = vadd.f32 %v1228, %v1244
    %v1249 = vtanh.pop %v1247
    %v1250 = vtanh.pop %v1248
    %1253 = vrot.lane.b32.xlu0 %v1249, 64
    %v1254 = vpop.permute.xlu0 %1253
    %1255 = vrot.lane.b32.xlu0 %v1250, 64
    %v1256 = vpop.permute.xlu0 %1255
    %v1259 = vmul.f32 %v1216, %v1254
    %v1260 = vmul.f32 %v1218, %v1256
    %v1263 = vrot.slane %v1259, 5
    %v1264 = vrot.slane %v1260, 4
    %v1265 = vsel %vm517, %v1264, %v1263
    %v1266 = vsel %vm266, %v1265, 0
    %1268 = vmatprep.subr.mxu0 %v351
    %1269 = vmatpush1.msra.mxu0 %v350
    %1270 = vmatprep.subr.mxu0 %v353
    %1271 = vmatpush1.msra.mxu0 %v352
    %1272 = vmatprep.subr.mxu0 %v355
    %1273 = vmatpush1.msra.mxu0 %v354
    %1274 = vmatprep.subr.mxu0 %v357
    %1275 = vmatpush1.msra.mxu0 %v356
    %1276 = vmatprep.subr.mxu0 %v359
    %1277 = vmatpush1.msra.mxu0 %v358
    %1278 = vmatprep.subr.mxu0 %v361
    %1279 = vmatpush1.msra.mxu0 %v360
    %1280 = vmatprep.subr.mxu0 %v363
    %1281 = vmatpush1.msra.mxu0 %v362
    %1282 = vmatprep.subr.mxu0 %v365
    %1283 = vmatpush1.msra.mxu0 %v364
    %1284 = vmatprep.subr.mxu0 0.0
    %1285 = vmatpush1.msra.mxu0 0.0
    %1286 = vmatprep.subr.mxu0 0.0
    %1287 = vmatpush1.msra.mxu0 0.0
    %1288 = vmatprep.subr.mxu0 0.0
    %1289 = vmatpush1.msra.mxu0 0.0
    %1290 = vmatprep.subr.mxu0 0.0
    %1291 = vmatpush1.msra.mxu0 0.0
    %1292 = vmatprep.subr.mxu0 0.0
    %1293 = vmatpush1.msra.mxu0 0.0
    %1294 = vmatprep.subr.mxu0 0.0
    %1295 = vmatpush1.msra.mxu0 0.0
    %1296 = vmatprep.subr.mxu0 0.0
    %1297 = vmatpush1.msra.mxu0 0.0
    %1298 = vmatprep.subr.mxu0 0.0
    %1299 = vmatpush1.msra.mxu0 0.0
    %1300 = vmatprep.subr.mxu0 0.0
    %1301 = vmatpush1.msra.mxu0 0.0
    %1302 = vmatprep.subr.mxu0 0.0
    %1303 = vmatpush1.msra.mxu0 0.0
    %1304 = vmatprep.subr.mxu0 0.0
    %1305 = vmatpush1.msra.mxu0 0.0
    %1306 = vmatprep.subr.mxu0 0.0
    %1307 = vmatpush1.msra.mxu0 0.0
    %1308 = vmatprep.subr.mxu0 0.0
    %1309 = vmatpush1.msra.mxu0 0.0
    %1310 = vmatprep.subr.mxu0 0.0
    %1311 = vmatpush1.msra.mxu0 0.0
    %1312 = vmatprep.subr.mxu0 0.0
    %1313 = vmatpush1.msra.mxu0 0.0
    %1314 = vmatprep.subr.mxu0 0.0
    %1315 = vmatpush1.msra.mxu0 0.0
    %1316 = vmatprep.subr.mxu0 0.0
    %1317 = vmatpush1.msra.mxu0 0.0
    %1318 = vmatprep.subr.mxu0 0.0
    %1319 = vmatpush1.msra.mxu0 0.0
    %1320 = vmatprep.subr.mxu0 0.0
    %1321 = vmatpush1.msra.mxu0 0.0
    %1322 = vmatprep.subr.mxu0 0.0
    %1323 = vmatpush1.msra.mxu0 0.0
    %1324 = vmatprep.subr.mxu0 0.0
    %1325 = vmatpush1.msra.mxu0 0.0
    %1326 = vmatprep.subr.mxu0 0.0
    %1327 = vmatpush1.msra.mxu0 0.0
    %1328 = vmatprep.subr.mxu0 0.0
    %1329 = vmatpush1.msra.mxu0 0.0
    %1330 = vmatprep.subr.mxu0 0.0
    %1331 = vmatpush1.msra.mxu0 0.0
    %1332 = vmatprep.mubr.f32.mxu0 0.0
    %1333 = vmatmul.mubr.f32.gmra.mrb[0].mxu0 %v1266
    %v1334 = vpop.f32.mrb[0].mxu0
    %v1335 = vadd.f32 0.0, %v1334
    %v1336 = vpop.f32.mrb[0].mxu0
    %v1337 = vadd.f32 0.0, %v1336
    %1338 = vdwg.mxu0
    %v1341 = vrot.slane %v1335, 2
    %v1342 = vrot.slane %v1337, 2
    %v1343 = vrot.slane %v1335, 3
    %v1344 = vrot.slane %v1337, 3
    %v1349 = vadd.f32 %v340, %v1341
    %v1350 = vadd.f32 %v342, %v1342
    %v1351 = vadd.f32 %v346, %v1343
    %v1352 = vadd.f32 %v348, %v1344
    %v1353 = vmul.f32 %v1349, 0.5
    %v1354 = vmul.f32 %v1350, 0.5
    %v1355 = vmul.f32 %v1351, 0.5
    %v1356 = vmul.f32 %v1352, 0.5
    %v1357 = vtanh.pop %v1353
    %v1358 = vtanh.pop %v1354
    %v1359 = vtanh.pop %v1355
    %v1360 = vtanh.pop %v1356
    %v1361 = vmul.f32 %v1357, 0.5
    %v1362 = vmul.f32 %v1358, 0.5
    %v1363 = vmul.f32 %v1359, 0.5
    %v1364 = vmul.f32 %v1360, 0.5
    %v1365 = vadd.f32 %v1361, 0.5
    %v1366 = vadd.f32 %v1362, 0.5
    %v1367 = vadd.f32 %v1363, 0.5
    %v1368 = vadd.f32 %v1364, 0.5
    %v1369 = vtanh.pop %v1350
    %v1370 = vtanh.pop %v1352
    %v1373 = vrot.slane %v1247, 7
    %v1374 = vrot.slane %v1248, 7
    %v1377 = vmul.f32 %v1365, %v1373
    %v1378 = vmul.f32 %v1367, %v1374
    %1381 = vrot.lane.b32.xlu0 %v1369, 64
    %v1382 = vpop.permute.xlu0 %1381
    %1383 = vrot.lane.b32.xlu0 %v1370, 64
    %v1384 = vpop.permute.xlu0 %1383
    %v1387 = vmul.f32 %v1365, %v1382
    %v1388 = vmul.f32 %v1367, %v1384
    %1391 = vrot.lane.b32.xlu0 %v1387, 64
    %v1392 = vpop.permute.xlu0 %1391
    %1393 = vrot.lane.b32.xlu0 %v1388, 64
    %v1394 = vpop.permute.xlu0 %1393
    %v1397 = vadd.f32 %v1377, %v1392
    %v1398 = vadd.f32 %v1378, %v1394
    %v1399 = vtanh.pop %v1397
    %v1400 = vtanh.pop %v1398
    %1403 = vrot.lane.b32.xlu0 %v1399, 64
    %v1404 = vpop.permute.xlu0 %1403
    %1405 = vrot.lane.b32.xlu0 %v1400, 64
    %v1406 = vpop.permute.xlu0 %1405
    %v1409 = vmul.f32 %v1366, %v1404
    %v1410 = vmul.f32 %v1368, %v1406
    %v1413 = vrot.slane %v1409, 6
    %v1414 = vrot.slane %v1410, 5
    %v1415 = vsel %vm517, %v1414, %v1413
    %v1416 = vsel %vm266, %v1415, 0
    %1418 = vmatprep.subr.mxu0 %v351
    %1419 = vmatpush1.msra.mxu0 %v350
    %1420 = vmatprep.subr.mxu0 %v353
    %1421 = vmatpush1.msra.mxu0 %v352
    %1422 = vmatprep.subr.mxu0 %v355
    %1423 = vmatpush1.msra.mxu0 %v354
    %1424 = vmatprep.subr.mxu0 %v357
    %1425 = vmatpush1.msra.mxu0 %v356
    %1426 = vmatprep.subr.mxu0 %v359
    %1427 = vmatpush1.msra.mxu0 %v358
    %1428 = vmatprep.subr.mxu0 %v361
    %1429 = vmatpush1.msra.mxu0 %v360
    %1430 = vmatprep.subr.mxu0 %v363
    %1431 = vmatpush1.msra.mxu0 %v362
    %1432 = vmatprep.subr.mxu0 %v365
    %1433 = vmatpush1.msra.mxu0 %v364
    %1434 = vmatprep.subr.mxu0 0.0
    %1435 = vmatpush1.msra.mxu0 0.0
    %1436 = vmatprep.subr.mxu0 0.0
    %1437 = vmatpush1.msra.mxu0 0.0
    %1438 = vmatprep.subr.mxu0 0.0
    %1439 = vmatpush1.msra.mxu0 0.0
    %1440 = vmatprep.subr.mxu0 0.0
    %1441 = vmatpush1.msra.mxu0 0.0
    %1442 = vmatprep.subr.mxu0 0.0
    %1443 = vmatpush1.msra.mxu0 0.0
    %1444 = vmatprep.subr.mxu0 0.0
    %1445 = vmatpush1.msra.mxu0 0.0
    %1446 = vmatprep.subr.mxu0 0.0
    %1447 = vmatpush1.msra.mxu0 0.0
    %1448 = vmatprep.subr.mxu0 0.0
    %1449 = vmatpush1.msra.mxu0 0.0
    %1450 = vmatprep.subr.mxu0 0.0
    %1451 = vmatpush1.msra.mxu0 0.0
    %1452 = vmatprep.subr.mxu0 0.0
    %1453 = vmatpush1.msra.mxu0 0.0
    %1454 = vmatprep.subr.mxu0 0.0
    %1455 = vmatpush1.msra.mxu0 0.0
    %1456 = vmatprep.subr.mxu0 0.0
    %1457 = vmatpush1.msra.mxu0 0.0
    %1458 = vmatprep.subr.mxu0 0.0
    %1459 = vmatpush1.msra.mxu0 0.0
    %1460 = vmatprep.subr.mxu0 0.0
    %1461 = vmatpush1.msra.mxu0 0.0
    %1462 = vmatprep.subr.mxu0 0.0
    %1463 = vmatpush1.msra.mxu0 0.0
    %1464 = vmatprep.subr.mxu0 0.0
    %1465 = vmatpush1.msra.mxu0 0.0
    %1466 = vmatprep.subr.mxu0 0.0
    %1467 = vmatpush1.msra.mxu0 0.0
    %1468 = vmatprep.subr.mxu0 0.0
    %1469 = vmatpush1.msra.mxu0 0.0
    %1470 = vmatprep.subr.mxu0 0.0
    %1471 = vmatpush1.msra.mxu0 0.0
    %1472 = vmatprep.subr.mxu0 0.0
    %1473 = vmatpush1.msra.mxu0 0.0
    %1474 = vmatprep.subr.mxu0 0.0
    %1475 = vmatpush1.msra.mxu0 0.0
    %1476 = vmatprep.subr.mxu0 0.0
    %1477 = vmatpush1.msra.mxu0 0.0
    %1478 = vmatprep.subr.mxu0 0.0
    %1479 = vmatpush1.msra.mxu0 0.0
    %1480 = vmatprep.subr.mxu0 0.0
    %1481 = vmatpush1.msra.mxu0 0.0
    %1482 = vmatprep.mubr.f32.mxu0 0.0
    %1483 = vmatmul.mubr.f32.gmra.mrb[0].mxu0 %v1416
    %v1484 = vpop.f32.mrb[0].mxu0
    %v1485 = vadd.f32 0.0, %v1484
    %v1486 = vpop.f32.mrb[0].mxu0
    %v1487 = vadd.f32 0.0, %v1486
    %1488 = vdwg.mxu0
    %v1491 = vrot.slane %v1485, 1
    %v1492 = vrot.slane %v1487, 1
    %v1493 = vrot.slane %v1485, 2
    %v1494 = vrot.slane %v1487, 2
    %v1499 = vadd.f32 %v340, %v1491
    %v1500 = vadd.f32 %v342, %v1492
    %v1501 = vadd.f32 %v346, %v1493
    %v1502 = vadd.f32 %v348, %v1494
    %v1503 = vmul.f32 %v1499, 0.5
    %v1504 = vmul.f32 %v1500, 0.5
    %v1505 = vmul.f32 %v1501, 0.5
    %v1506 = vmul.f32 %v1502, 0.5
    %v1507 = vtanh.pop %v1503
    %v1508 = vtanh.pop %v1504
    %v1509 = vtanh.pop %v1505
    %v1510 = vtanh.pop %v1506
    %v1511 = vmul.f32 %v1507, 0.5
    %v1512 = vmul.f32 %v1508, 0.5
    %v1513 = vmul.f32 %v1509, 0.5
    %v1514 = vmul.f32 %v1510, 0.5
    %v1515 = vadd.f32 %v1511, 0.5
    %v1516 = vadd.f32 %v1512, 0.5
    %v1517 = vadd.f32 %v1513, 0.5
    %v1518 = vadd.f32 %v1514, 0.5
    %v1519 = vtanh.pop %v1500
    %v1520 = vtanh.pop %v1502
    %v1523 = vrot.slane %v1397, 7
    %v1524 = vrot.slane %v1398, 7
    %v1527 = vmul.f32 %v1515, %v1523
    %v1528 = vmul.f32 %v1517, %v1524
    %1531 = vrot.lane.b32.xlu0 %v1519, 64
    %v1532 = vpop.permute.xlu0 %1531
    %1533 = vrot.lane.b32.xlu0 %v1520, 64
    %v1534 = vpop.permute.xlu0 %1533
    %v1537 = vmul.f32 %v1515, %v1532
    %v1538 = vmul.f32 %v1517, %v1534
    %1541 = vrot.lane.b32.xlu0 %v1537, 64
    %v1542 = vpop.permute.xlu0 %1541
    %1543 = vrot.lane.b32.xlu0 %v1538, 64
    %v1544 = vpop.permute.xlu0 %1543
    %v1547 = vadd.f32 %v1527, %v1542
    %v1548 = vadd.f32 %v1528, %v1544
    %v1549 = vtanh.pop %v1547
    %v1550 = vtanh.pop %v1548
    %1553 = vrot.lane.b32.xlu0 %v1549, 64
    %v1554 = vpop.permute.xlu0 %1553
    %1555 = vrot.lane.b32.xlu0 %v1550, 64
    %v1556 = vpop.permute.xlu0 %1555
    %v1559 = vmul.f32 %v1516, %v1554
    %v1560 = vmul.f32 %v1518, %v1556
    %v1563 = vrot.slane %v1560, 7
    %vm1566 = vcmask 523271
    %1567 = vst.msk [vmem:[#allocation6 - $0x7] sm:$0x80] %vm1566, %v1559
    %vm1568 = vcmask 516096
    %1569 = vst.msk [vmem:[#allocation6 + $0x1] sm:$0x1] %vm1568, %v1563
    %v1572 = vrot.slane %v1548, 7
    %1573 = vrot.lane.b32.xlu0 %v1547, 64
    %v1574 = vpop.permute.xlu0 %1573
    %1575 = vrot.lane.b32.xlu0 %v1572, 64
    %v1576 = vpop.permute.xlu0 %1575
    %1579 = vst.msk [vmem:[#allocation8 - $0x7] sm:$0x80] %vm1566, %v1574
    %1580 = vst.msk [vmem:[#allocation8 + $0x1] sm:$0x1] %vm1568, %v1576
    %v1581 = vld [vmem:[%s8 + $0x1] sm:$0x1]
    %v1582 = vld [vmem:[%s8 + $0x2] sm:$0x1]
    %v1583 = vlaneseq
    %v1584 = vshrl.u32 %v1583, 7
    %v1585 = vsub.s32 0, %v1584
    %v1586 = vrot.slane %v1581, %v1585
    %v1587 = vmul.f32 %v512, %v1586
    %v1588 = vmul.f32 %v513, %v1586
    %v1591 = vrot.slane %v1588, 7
    %v1592 = vsel %vm517, %v1591, %v1587
    %vm1594 = vcmask 517120
    %v1595 = vsel %vm1594, %v1592, 0.0
    %1596 = vadd.xlane.f32.xlu0 %v1595
    %v1597 = vpop.xlane.xlu0 %1596
    %v1598 = vmul.f32 %v660, %v1586
    %v1599 = vmul.f32 %v661, %v1586
    %v1602 = vrot.slane %v1599, 7
    %vm1603 = vcmask 1042434
    %v1604 = vsel %vm1603, %v1602, %v1598
    %vm1606 = vcmask 518145
    %v1607 = vsel %vm1606, %v1604, 0.0
    %1608 = vadd.xlane.f32.xlu0 %v1607
    %v1609 = vpop.xlane.xlu0 %1608
    %v1610 = vmul.f32 %v809, %v1586
    %v1611 = vmul.f32 %v810, %v1586
    %v1614 = vrot.slane %v1611, 7
    %vm1615 = vcmask 1043459
    %v1616 = vsel %vm1615, %v1614, %v1610
    %vm1618 = vcmask 519170
    %v1619 = vsel %vm1618, %v1616, 0.0
    %1620 = vadd.xlane.f32.xlu0 %v1619
    %v1621 = vpop.xlane.xlu0 %1620
    %v1622 = vmul.f32 %v959, %v1586
    %v1623 = vmul.f32 %v960, %v1586
    %v1626 = vrot.slane %v1623, 7
    %vm1627 = vcmask 1044484
    %v1628 = vsel %vm1627, %v1626, %v1622
    %vm1630 = vcmask 520195
    %v1631 = vsel %vm1630, %v1628, 0.0
    %1632 = vadd.xlane.f32.xlu0 %v1631
    %v1633 = vpop.xlane.xlu0 %1632
    %v1634 = vmul.f32 %v1109, %v1586
    %v1635 = vmul.f32 %v1110, %v1586
    %v1638 = vrot.slane %v1635, 7
    %vm1639 = vcmask 1045509
    %v1640 = vsel %vm1639, %v1638, %v1634
    %vm1642 = vcmask 521220
    %v1643 = vsel %vm1642, %v1640, 0.0
    %1644 = vadd.xlane.f32.xlu0 %v1643
    %v1645 = vpop.xlane.xlu0 %1644
    %v1646 = vmul.f32 %v1259, %v1586
    %v1647 = vmul.f32 %v1260, %v1586
    %v1650 = vrot.slane %v1647, 7
    %vm1651 = vcmask 1046534
    %v1652 = vsel %vm1651, %v1650, %v1646
    %vm1654 = vcmask 522245
    %v1655 = vsel %vm1654, %v1652, 0.0
    %1656 = vadd.xlane.f32.xlu0 %v1655
    %v1657 = vpop.xlane.xlu0 %1656
    %v1658 = vmul.f32 %v1409, %v1586
    %v1659 = vmul.f32 %v1410, %v1586
    %v1662 = vrot.slane %v1659, 7
    %vm1663 = vcmask 1047559
    %v1664 = vsel %vm1663, %v1662, %v1658
    %vm1666 = vcmask 523270
    %v1667 = vsel %vm1666, %v1664, 0.0
    %1668 = vadd.xlane.f32.xlu0 %v1667
    %v1669 = vpop.xlane.xlu0 %1668
    %v1670 = vmul.f32 %v1559, %v1586
    %v1671 = vmul.f32 %v1560, %v1586
    %v1674 = vrot.slane %v1671, 7
    %v1677 = vsel %vm1566, %v1670, 0.0
    %1678 = vadd.xlane.f32.xlu0 %v1677
    %v1679 = vpop.xlane.xlu0 %1678
    %v1680 = vsel %vm1568, %v1674, 0.0
    %1681 = vadd.xlane.f32.xlu0 %v1680
    %v1682 = vpop.xlane.xlu0 %1681
    %v1684 = vrot.slane %v1609, 1
    %v1687 = vrot.slane %v1621, 2
    %v1690 = vrot.slane %v1633, 3
    %v1693 = vrot.slane %v1645, 4
    %v1696 = vrot.slane %v1657, 5
    %v1699 = vrot.slane %v1669, 6
    %vm1703 = vcmask 1040384
    %v1704 = vrot.slane %v1679, 7
    %v1705 = vrot.slane %v1682, 7
    %v1706 = vsel %vm1703, %v1704, %v1705
    %vm1708 = vcmask 7168
    %v1709 = vsel %vm1708, %v1597, %v1684
    %v1710 = vsel %vm57, %v1709, %v1687
    %vm1711 = vcmask 23552
    %v1712 = vsel %vm1711, %v1710, %v1690
    %vm1713 = vcmask 31744
    %v1714 = vsel %vm1713, %v1712, %v1693
    %vm1715 = vcmask 39936
    %v1716 = vsel %vm1715, %v1714, %v1696
    %v1717 = vsel %vm143, %v1716, %v1699
    %vm1718 = vcmask 56320
    %v1719 = vsel %vm1718, %v1717, %v1706
    %s1721 = vtos %v1582
    %v1722 = vstv %s1721
    %v1724 = vadd.f32 %v1719, %v1722
    %vm1725 = vcmask 58368
    %1726 = vst.msk [vmem:[#allocation5] sm:$0x3] %vm1725, %v1724
    // Predicated region
    $region42: #{critic_forward.1} parent=1 // pred_check
      _
    $region43: #{critic_forward.1} parent=1 // pred_check_branch
      %1728 = sbr.rel (0) target = $region45
    $region44: #{critic_forward.1} parent=1 // pred_region
      %s1730 = ssub.s32 32, 32
      %1731 = vsyncadd [#allocation4], %s1730
      %s1733 = sshll.u32 [#allocation5], 4
      %s1734 = int_to_ptr.vmem [resolvable:$true] %s1733
      %1736 = dma.vmem_to_hbm [thread:$0]  %s1734, 32, %s9, [#allocation4]
    $region45: #{critic_forward.1} parent=1 // pred_fallthru
      _
    // Predicated region
    $region46: #{critic_forward.1} parent=1 // pred_check
      _
    $region47: #{critic_forward.1} parent=1 // pred_check_branch
      %1738 = sbr.rel (0) target = $region49
    $region48: #{critic_forward.1} parent=1 // pred_region
      %s1740 = ssub.s32 32, 32
      %1741 = vsyncadd [#allocation7], %s1740
      %s1743 = sshll.u32 [#allocation6], 4
      %s1744 = int_to_ptr.vmem [resolvable:$true] %s1743
      %1746 = dma.vmem_to_hbm [thread:$0]  %s1744, 32, %s10, [#allocation7]
    $region49: #{critic_forward.1} parent=1 // pred_fallthru
      _
    // Predicated region
    $region50: #{critic_forward.1} parent=1 // pred_check
      _
    $region51: #{critic_forward.1} parent=1 // pred_check_branch
      %1748 = sbr.rel (0) target = $region53
    $region52: #{critic_forward.1} parent=1 // pred_region
      %s1750 = ssub.s32 32, 32
      %1751 = vsyncadd [#allocation7], %s1750
      %s1753 = sshll.u32 [#allocation8], 4
      %s1754 = int_to_ptr.vmem [resolvable:$true] %s1753
      %1756 = dma.vmem_to_hbm [thread:$0]  %s1754, 32, %s11, [#allocation7]
    $region53: #{critic_forward.1} parent=1 // pred_fallthru
      _
    // Predicated region
    $region54: #{critic_forward.1} parent=1 // pred_check
      _
    $region55: #{critic_forward.1} parent=1 // pred_check_branch
      %1758 = sbr.rel (0) target = $region57
    $region56: #{critic_forward.1} parent=1 // pred_region
      %1759 = dma.done [#allocation4], 32
    $region57: #{critic_forward.1} parent=1 // pred_fallthru
      _
    // Predicated region
    $region58: #{critic_forward.1} parent=1 // pred_check
      _
    $region59: #{critic_forward.1} parent=1 // pred_check_branch
      %1761 = sbr.rel (0) target = $region61
    $region60: #{critic_forward.1} parent=1 // pred_region
      %1762 = dma.done [#allocation7], 32
    $region61: #{critic_forward.1} parent=1 // pred_fallthru
      _
    // Predicated region
    $region62: #{critic_forward.1} parent=1 // pred_check
      _
    $region63: #{critic_forward.1} parent=1 // pred_check_branch
      %1764 = sbr.rel (0) target = $region65
    $region64: #{critic_forward.1} parent=1 // pred_region
      %1765 = dma.done [#allocation7], 32
    $region65: #{critic_forward.1} parent=1 // pred_fallthru
      _
    %1766 = vsyncpa [#allocation3], 1
    %1767 = vsyncpa [#allocation4], 1
    %1768 = vsyncpa [#allocation7], 1

</llo_original>
